<compile_context>
chip_gen: v6e
topology: v6e:2x2x1
jax: 0.10.0
libtpu: 0.0.40
codegen_flags: <defaults>
</compile_context>

<pallas_src>
import functools

import jax
import jax.numpy as jnp
from jax.experimental import pallas as pl
from jax.experimental.pallas import tpu as pltpu

_BP = 8  # batch rows padded to one sublane tile


def gru_layer_kernel(x_ref, wih_ref, whh_ref, bih_ref, bhh_ref,
                     out_ref, hlast_ref, gx_ref, h_ref, *,
                     seq_len, batch, hid_dim):
    """One full GRU layer (all timesteps, all batch rows) in a single grid step.

    x_ref    : (L*Bp, D)    time-major input, batch padded to Bp sublanes
    wih_ref  : (D, 3H)      input weights, pre-transposed, gate order [r, z, n]
    whh_ref  : (H, 3H)      hidden weights, pre-transposed
    bih_ref  : (1, 3H)
    bhh_ref  : (1, 3H)
    out_ref  : (L*Bp, H)    per-timestep hidden states (time-major)
    hlast_ref: (Bp, H)      final hidden state
    gx_ref   : VMEM scratch (L*Bp, 3H)  precomputed input projections
    h_ref    : VMEM scratch (Bp, H)     running hidden state
    """
    hd = hid_dim

    # 1) All input projections in one MXU matmul (replaces L tiny matmuls).
    gx_ref[...] = (
        jnp.dot(x_ref[...], wih_ref[...], preferred_element_type=jnp.float32)
        + bih_ref[...])

    # 2) Zero initial hidden state (nn.GRU default h0 = 0).
    h_ref[...] = jnp.zeros_like(h_ref)

    whh = whh_ref[...]
    bhh = bhh_ref[...]

    # 3) Sequential recurrence; hidden state stays in VMEM scratch.
    def step(t, carry):
        row = pl.multiple_of(t * batch, batch)            # sublane-aligned start
        h_prev = h_ref[...]                               # (Bp, H)
        gx = gx_ref[pl.ds(row, batch), :]                 # (Bp, 3H)
        gh = jnp.dot(h_prev, whh, preferred_element_type=jnp.float32) + bhh
        r = jax.nn.sigmoid(gx[:, 0:hd] + gh[:, 0:hd])
        z = jax.nn.sigmoid(gx[:, hd:2 * hd] + gh[:, hd:2 * hd])
        n = jnp.tanh(gx[:, 2 * hd:3 * hd] + r * gh[:, 2 * hd:3 * hd])
        h_new = (1.0 - z) * n + z * h_prev
        h_ref[...] = h_new
        out_ref[pl.ds(row, batch), :] = h_new.astype(out_ref.dtype)
        return carry

    jax.lax.fori_loop(0, seq_len, step, 0, unroll=True)

    hlast_ref[...] = h_ref[...].astype(hlast_ref.dtype)


def gru_single_layer(x, w_ih, w_hh, b_ih, b_hh):
    """One nn.GRU layer forward.  x: (B, L, D) -> (out (B, L, H), h_n (B, H))."""
    b, l, d = x.shape
    hd = w_hh.shape[1]
    bp = _BP
    assert b <= bp, "this small-shape kernel assumes batch <= 8"

    # Wrapper-side layout work (free): time-major, batch padded to a sublane
    # tile, weights pre-transposed so the kernel only does plain matmuls.
    xt = jnp.transpose(x, (1, 0, 2))                       # (L, B, D)
    xt = jnp.pad(xt, ((0, 0), (0, bp - b), (0, 0)))        # (L, Bp, D)
    x2d = xt.reshape(l * bp, d).astype(jnp.float32)
    wih_t = jnp.transpose(w_ih).astype(jnp.float32)        # (D, 3H)
    whh_t = jnp.transpose(w_hh).astype(jnp.float32)        # (H, 3H)
    bih2 = b_ih.reshape(1, 3 * hd).astype(jnp.float32)
    bhh2 = b_hh.reshape(1, 3 * hd).astype(jnp.float32)

    kernel = functools.partial(
        gru_layer_kernel, seq_len=l, batch=bp, hid_dim=hd)

    out2d, h_last = pl.pallas_call(
        kernel,
        out_shape=(
            jax.ShapeDtypeStruct((l * bp, hd), jnp.float32),
            jax.ShapeDtypeStruct((bp, hd), jnp.float32),
        ),
        grid_spec=pltpu.PrefetchScalarGridSpec(
            num_scalar_prefetch=0,
            grid=(1,),
            in_specs=[
                pl.BlockSpec((l * bp, d), lambda i: (0, 0)),
                pl.BlockSpec((d, 3 * hd), lambda i: (0, 0)),
                pl.BlockSpec((hd, 3 * hd), lambda i: (0, 0)),
                pl.BlockSpec((1, 3 * hd), lambda i: (0, 0)),
                pl.BlockSpec((1, 3 * hd), lambda i: (0, 0)),
            ],
            out_specs=(
                pl.BlockSpec((l * bp, hd), lambda i: (0, 0)),
                pl.BlockSpec((bp, hd), lambda i: (0, 0)),
            ),
            scratch_shapes=[
                pltpu.VMEM((l * bp, 3 * hd), jnp.float32),
                pltpu.VMEM((bp, hd), jnp.float32),
            ],
        ),
        compiler_params=pltpu.CompilerParams(
            dimension_semantics=("arbitrary",)),
    )(x2d, wih_t, whh_t, bih2, bhh2)

    out = out2d.reshape(l, bp, hd)[:, :b, :]               # (L, B, H)
    out = jnp.transpose(out, (1, 0, 2))                    # (B, L, H)
    return out, h_last[:b, :]


def gru_layer_forward(x, params):
    """Forward of the PyTorch GRULayer module (inference).

    x: (B, L, in_dim).  params: list of per-layer (w_ih, w_hh, b_ih, b_hh)
    in PyTorch layouts: w_ih=(3H, D_layer), w_hh=(3H, H), biases=(3H,).

    Returns (out[-1, :, :], h[-1, :, :]) exactly as the module does:
      out is (B, L, H) (batch_first) so out[-1] is the LAST BATCH element's
      full sequence, shape (L, H); h is (n_layers, B, H) so h[-1] is the last
      layer's final hidden state, shape (B, H).
    """
    out = x
    h_last = None
    for (w_ih, w_hh, b_ih, b_hh) in params:
        out, h_last = gru_single_layer(out, w_ih, w_hh, b_ih, b_hh)
        # TODO(synk): nn.GRU applies dropout between stacked layers only in
        # training mode; this inference forward intentionally omits it.
    return out[-1, :, :], h_last


def gru_reference(x, params):
    """Pure-JAX reference of the same forward (PyTorch GRU equations)."""
    def run_layer(inp, w_ih, w_hh, b_ih, b_hh):
        hd = w_hh.shape[1]
        b = inp.shape[0]

        def step(h, x_t):
            gx = x_t @ w_ih.T + b_ih
            gh = h @ w_hh.T + b_hh
            r = jax.nn.sigmoid(gx[:, :hd] + gh[:, :hd])
            z = jax.nn.sigmoid(gx[:, hd:2 * hd] + gh[:, hd:2 * hd])
            n = jnp.tanh(gx[:, 2 * hd:] + r * gh[:, 2 * hd:])
            h_new = (1.0 - z) * n + z * h
            return h_new, h_new

        h0 = jnp.zeros((b, hd), jnp.float32)
        xs = jnp.transpose(inp, (1, 0, 2))                 # (L, B, D)
        h_n, outs = jax.lax.scan(step, h0, xs)
        return jnp.transpose(outs, (1, 0, 2)), h_n

    out = x
    h_last = None
    for (w_ih, w_hh, b_ih, b_hh) in params:
        out, h_last = run_layer(out, w_ih, w_hh, b_ih, b_hh)
    return out[-1, :, :], h_last


if __name__ == "__main__":
    # Small shapes consistent with the module: batch=2, seq_len=8,
    # in_dim=4 features, hid_dim=32, n_layers=2.
    B, L, D, H, N_LAYERS = 2, 8, 4, 32, 2

    key = jax.random.PRNGKey(0)
    params = []
    in_dim = D
    for _layer in range(N_LAYERS):
        key, k1, k2, k3, k4 = jax.random.split(key, 5)
        w_ih = jax.random.normal(k1, (3 * H, in_dim), dtype=jnp.float32) * 0.1
        w_hh = jax.random.normal(k2, (3 * H, H), dtype=jnp.float32) * 0.1
        b_ih = jax.random.normal(k3, (3 * H,), dtype=jnp.float32) * 0.1
        b_hh = jax.random.normal(k4, (3 * H,), dtype=jnp.float32) * 0.1
        params.append((w_ih, w_hh, b_ih, b_hh))
        in_dim = H

    key, kx = jax.random.split(key)
    x = jax.random.normal(kx, (B, L, D), dtype=jnp.float32)

    out, h = gru_layer_forward(x, params)
    out = jax.block_until_ready(out)
    h = jax.block_until_ready(h)

    out_ref, h_ref = gru_reference(x, params)
    assert out.shape == (L, H), out.shape
    assert h.shape == (B, H), h.shape
    assert jnp.allclose(out, out_ref, atol=1e-5, rtol=1e-5), "out mismatch vs reference"
    assert jnp.allclose(h, h_ref, atol=1e-5, rtol=1e-5), "h mismatch vs reference"

    print("KERNEL_OK")
</pallas_src>

<mosaic_0001>
module attributes {stable_mosaic.version = 11 : i64} {
  func.func @gru_layer_kernel(%arg0: i32, %arg1: memref<64x4xf32, #tpu.memory_space<vmem>>, %arg2: memref<4x96xf32, #tpu.memory_space<vmem>>, %arg3: memref<32x96xf32, #tpu.memory_space<vmem>>, %arg4: memref<1x96xf32, #tpu.memory_space<vmem>>, %arg5: memref<1x96xf32, #tpu.memory_space<vmem>>, %arg6: memref<64x32xf32, #tpu.memory_space<vmem>>, %arg7: memref<8x32xf32, #tpu.memory_space<vmem>>, %arg8: memref<64x96xf32, #tpu.memory_space<vmem>>, %arg9: memref<8x32xf32, #tpu.memory_space<vmem>>) attributes {dimension_semantics = [#tpu.dimension_semantics<arbitrary>], iteration_bounds = array<i64: 1>, scalar_prefetch = 0 : i64, scratch_operands = 2 : i64, tpu.core_type = #tpu.core_type<tc>, window_params = [{pipeline_mode = #tpu.pipeline_mode<synchronous>, transform_indices = @transform_0, window_bounds = array<i64: 64, 4>}, {pipeline_mode = #tpu.pipeline_mode<synchronous>, transform_indices = @transform_1, window_bounds = array<i64: 4, 96>}, {pipeline_mode = #tpu.pipeline_mode<synchronous>, transform_indices = @transform_2, window_bounds = array<i64: 32, 96>}, {pipeline_mode = #tpu.pipeline_mode<synchronous>, transform_indices = @transform_3, window_bounds = array<i64: 1, 96>}, {pipeline_mode = #tpu.pipeline_mode<synchronous>, transform_indices = @transform_4, window_bounds = array<i64: 1, 96>}, {pipeline_mode = #tpu.pipeline_mode<synchronous>, transform_indices = @transform_5, window_bounds = array<i64: 64, 32>}, {pipeline_mode = #tpu.pipeline_mode<synchronous>, transform_indices = @transform_6, window_bounds = array<i64: 8, 32>}]} {
    %c0 = arith.constant 0 : index
    %c0_0 = arith.constant 0 : index
    %0 = vector.load %arg1[%c0, %c0_0] : memref<64x4xf32, #tpu.memory_space<vmem>>, vector<64x4xf32>
    %c0_1 = arith.constant 0 : index
    %c0_2 = arith.constant 0 : index
    %1 = vector.load %arg2[%c0_1, %c0_2] : memref<4x96xf32, #tpu.memory_space<vmem>>, vector<4x96xf32>
    %cst = arith.constant dense<0.000000e+00> : vector<64x96xf32>
    %2 = tpu.matmul %0, %1, %cst {dimension_numbers = #tpu.dot_dimension_numbers<[1], [0], [0], [1], [0, 0, 1, 1], [], []>} : vector<64x4xf32>, vector<4x96xf32>, vector<64x96xf32> -> vector<64x96xf32>
    %c0_3 = arith.constant 0 : index
    %c0_4 = arith.constant 0 : index
    %3 = vector.load %arg4[%c0_3, %c0_4] : memref<1x96xf32, #tpu.memory_space<vmem>>, vector<1x96xf32>
    %4 = vector.broadcast %3 : vector<1x96xf32> to vector<64x96xf32>
    %5 = arith.addf %2, %4 : vector<64x96xf32>
    %c0_5 = arith.constant 0 : index
    %c0_6 = arith.constant 0 : index
    %6 = vector.load %arg8[%c0_5, %c0_6] : memref<64x96xf32, #tpu.memory_space<vmem>>, vector<64x96xf32>
    tpu.vector_store %arg8[%c0_5, %c0_6], %5 {strides = array<i32>} : memref<64x96xf32, #tpu.memory_space<vmem>>, vector<64x96xf32>,
    %cst_7 = arith.constant 0.000000e+00 : f32
    %7 = vector.broadcast %cst_7 : f32 to vector<8x32xf32>
    %c0_8 = arith.constant 0 : index
    %c0_9 = arith.constant 0 : index
    %8 = vector.load %arg9[%c0_8, %c0_9] : memref<8x32xf32, #tpu.memory_space<vmem>>, vector<8x32xf32>
    tpu.vector_store %arg9[%c0_8, %c0_9], %7 {strides = array<i32>} : memref<8x32xf32, #tpu.memory_space<vmem>>, vector<8x32xf32>,
    %c0_10 = arith.constant 0 : index
    %c0_11 = arith.constant 0 : index
    %9 = vector.load %arg3[%c0_10, %c0_11] : memref<32x96xf32, #tpu.memory_space<vmem>>, vector<32x96xf32>
    %c0_12 = arith.constant 0 : index
    %c0_13 = arith.constant 0 : index
    %10 = vector.load %arg5[%c0_12, %c0_13] : memref<1x96xf32, #tpu.memory_space<vmem>>, vector<1x96xf32>
    %c0_i32 = arith.constant 0 : i32
    %c8_i32 = arith.constant 8 : i32
    %11 = arith.muli %c0_i32, %c8_i32 : i32
    %12 = tpu.assume_multiple %11, 8 : i32
    %c0_14 = arith.constant 0 : index
    %c0_15 = arith.constant 0 : index
    %13 = vector.load %arg9[%c0_14, %c0_15] : memref<8x32xf32, #tpu.memory_space<vmem>>, vector<8x32xf32>
    %14 = arith.index_cast %12 : i32 to index
    %c0_16 = arith.constant 0 : index
    %15 = vector.load %arg8[%14, %c0_16] : memref<64x96xf32, #tpu.memory_space<vmem>>, vector<8x96xf32>
    %cst_17 = arith.constant dense<0.000000e+00> : vector<8x96xf32>
    %16 = tpu.matmul %13, %9, %cst_17 {dimension_numbers = #tpu.dot_dimension_numbers<[1], [0], [0], [1], [0, 0, 1, 1], [], []>} : vector<8x32xf32>, vector<32x96xf32>, vector<8x96xf32> -> vector<8x96xf32>
    %17 = vector.broadcast %10 : vector<1x96xf32> to vector<8x96xf32>
    %18 = arith.addf %16, %17 : vector<8x96xf32>
    %19 = vector.extract_strided_slice %15 {offsets = [0, 0], sizes = [8, 32], strides = [1, 1]} : vector<8x96xf32> to vector<8x32xf32>
    %20 = vector.extract_strided_slice %18 {offsets = [0, 0], sizes = [8, 32], strides = [1, 1]} : vector<8x96xf32> to vector<8x32xf32>
    %21 = arith.addf %19, %20 : vector<8x32xf32>
    %22 = arith.negf %21 : vector<8x32xf32>
    %23 = math.exp %22 : vector<8x32xf32>
    %cst_18 = arith.constant 1.000000e+00 : f32
    %24 = vector.broadcast %cst_18 : f32 to vector<8x32xf32>
    %25 = arith.addf %24, %23 : vector<8x32xf32>
    %26 = arith.divf %24, %25 : vector<8x32xf32>
    %27 = vector.extract_strided_slice %15 {offsets = [0, 32], sizes = [8, 32], strides = [1, 1]} : vector<8x96xf32> to vector<8x32xf32>
    %28 = vector.extract_strided_slice %18 {offsets = [0, 32], sizes = [8, 32], strides = [1, 1]} : vector<8x96xf32> to vector<8x32xf32>
    %29 = arith.addf %27, %28 : vector<8x32xf32>
    %30 = arith.negf %29 : vector<8x32xf32>
    %31 = math.exp %30 : vector<8x32xf32>
    %cst_19 = arith.constant 1.000000e+00 : f32
    %32 = vector.broadcast %cst_19 : f32 to vector<8x32xf32>
    %33 = arith.addf %32, %31 : vector<8x32xf32>
    %34 = arith.divf %32, %33 : vector<8x32xf32>
    %35 = vector.extract_strided_slice %15 {offsets = [0, 64], sizes = [8, 32], strides = [1, 1]} : vector<8x96xf32> to vector<8x32xf32>
    %36 = vector.extract_strided_slice %18 {offsets = [0, 64], sizes = [8, 32], strides = [1, 1]} : vector<8x96xf32> to vector<8x32xf32>
    %37 = arith.mulf %26, %36 : vector<8x32xf32>
    %38 = arith.addf %35, %37 : vector<8x32xf32>
    %39 = math.tanh %38 : vector<8x32xf32>
    %cst_20 = arith.constant 1.000000e+00 : f32
    %40 = vector.broadcast %cst_20 : f32 to vector<8x32xf32>
    %41 = arith.subf %40, %34 : vector<8x32xf32>
    %42 = arith.mulf %41, %39 : vector<8x32xf32>
    %43 = arith.mulf %34, %13 : vector<8x32xf32>
    %44 = arith.addf %42, %43 : vector<8x32xf32>
    %c0_21 = arith.constant 0 : index
    %c0_22 = arith.constant 0 : index
    %45 = vector.load %arg9[%c0_21, %c0_22] : memref<8x32xf32, #tpu.memory_space<vmem>>, vector<8x32xf32>
    tpu.vector_store %arg9[%c0_21, %c0_22], %44 {strides = array<i32>} : memref<8x32xf32, #tpu.memory_space<vmem>>, vector<8x32xf32>,
    %46 = arith.index_cast %12 : i32 to index
    %c0_23 = arith.constant 0 : index
    %47 = vector.load %arg6[%46, %c0_23] : memref<64x32xf32, #tpu.memory_space<vmem>>, vector<8x32xf32>
    tpu.vector_store %arg6[%46, %c0_23], %44 {strides = array<i32>} : memref<64x32xf32, #tpu.memory_space<vmem>>, vector<8x32xf32>,
    %c1_i32 = arith.constant 1 : i32
    %c8_i32_24 = arith.constant 8 : i32
    %48 = arith.muli %c1_i32, %c8_i32_24 : i32
    %49 = tpu.assume_multiple %48, 8 : i32
    %c0_25 = arith.constant 0 : index
    %c0_26 = arith.constant 0 : index
    %50 = vector.load %arg9[%c0_25, %c0_26] : memref<8x32xf32, #tpu.memory_space<vmem>>, vector<8x32xf32>
    %51 = arith.index_cast %49 : i32 to index
    %c0_27 = arith.constant 0 : index
    %52 = vector.load %arg8[%51, %c0_27] : memref<64x96xf32, #tpu.memory_space<vmem>>, vector<8x96xf32>
    %cst_28 = arith.constant dense<0.000000e+00> : vector<8x96xf32>
    %53 = tpu.matmul %50, %9, %cst_28 {dimension_numbers = #tpu.dot_dimension_numbers<[1], [0], [0], [1], [0, 0, 1, 1], [], []>} : vector<8x32xf32>, vector<32x96xf32>, vector<8x96xf32> -> vector<8x96xf32>
    %54 = vector.broadcast %10 : vector<1x96xf32> to vector<8x96xf32>
    %55 = arith.addf %53, %54 : vector<8x96xf32>
    %56 = vector.extract_strided_slice %52 {offsets = [0, 0], sizes = [8, 32], strides = [1, 1]} : vector<8x96xf32> to vector<8x32xf32>
    %57 = vector.extract_strided_slice %55 {offsets = [0, 0], sizes = [8, 32], strides = [1, 1]} : vector<8x96xf32> to vector<8x32xf32>
    %58 = arith.addf %56, %57 : vector<8x32xf32>
    %59 = arith.negf %58 : vector<8x32xf32>
    %60 = math.exp %59 : vector<8x32xf32>
    %cst_29 = arith.constant 1.000000e+00 : f32
    %61 = vector.broadcast %cst_29 : f32 to vector<8x32xf32>
    %62 = arith.addf %61, %60 : vector<8x32xf32>
    %63 = arith.divf %61, %62 : vector<8x32xf32>
    %64 = vector.extract_strided_slice %52 {offsets = [0, 32], sizes = [8, 32], strides = [1, 1]} : vector<8x96xf32> to vector<8x32xf32>
    %65 = vector.extract_strided_slice %55 {offsets = [0, 32], sizes = [8, 32], strides = [1, 1]} : vector<8x96xf32> to vector<8x32xf32>
    %66 = arith.addf %64, %65 : vector<8x32xf32>
    %67 = arith.negf %66 : vector<8x32xf32>
    %68 = math.exp %67 : vector<8x32xf32>
    %cst_30 = arith.constant 1.000000e+00 : f32
    %69 = vector.broadcast %cst_30 : f32 to vector<8x32xf32>
    %70 = arith.addf %69, %68 : vector<8x32xf32>
    %71 = arith.divf %69, %70 : vector<8x32xf32>
    %72 = vector.extract_strided_slice %52 {offsets = [0, 64], sizes = [8, 32], strides = [1, 1]} : vector<8x96xf32> to vector<8x32xf32>
    %73 = vector.extract_strided_slice %55 {offsets = [0, 64], sizes = [8, 32], strides = [1, 1]} : vector<8x96xf32> to vector<8x32xf32>
    %74 = arith.mulf %63, %73 : vector<8x32xf32>
    %75 = arith.addf %72, %74 : vector<8x32xf32>
    %76 = math.tanh %75 : vector<8x32xf32>
    %cst_31 = arith.constant 1.000000e+00 : f32
    %77 = vector.broadcast %cst_31 : f32 to vector<8x32xf32>
    %78 = arith.subf %77, %71 : vector<8x32xf32>
    %79 = arith.mulf %78, %76 : vector<8x32xf32>
    %80 = arith.mulf %71, %50 : vector<8x32xf32>
    %81 = arith.addf %79, %80 : vector<8x32xf32>
    %c0_32 = arith.constant 0 : index
    %c0_33 = arith.constant 0 : index
    %82 = vector.load %arg9[%c0_32, %c0_33] : memref<8x32xf32, #tpu.memory_space<vmem>>, vector<8x32xf32>
    tpu.vector_store %arg9[%c0_32, %c0_33], %81 {strides = array<i32>} : memref<8x32xf32, #tpu.memory_space<vmem>>, vector<8x32xf32>,
    %83 = arith.index_cast %49 : i32 to index
    %c0_34 = arith.constant 0 : index
    %84 = vector.load %arg6[%83, %c0_34] : memref<64x32xf32, #tpu.memory_space<vmem>>, vector<8x32xf32>
    tpu.vector_store %arg6[%83, %c0_34], %81 {strides = array<i32>} : memref<64x32xf32, #tpu.memory_space<vmem>>, vector<8x32xf32>,
    %c2_i32 = arith.constant 2 : i32
    %c8_i32_35 = arith.constant 8 : i32
    %85 = arith.muli %c2_i32, %c8_i32_35 : i32
    %86 = tpu.assume_multiple %85, 8 : i32
    %c0_36 = arith.constant 0 : index
    %c0_37 = arith.constant 0 : index
    %87 = vector.load %arg9[%c0_36, %c0_37] : memref<8x32xf32, #tpu.memory_space<vmem>>, vector<8x32xf32>
    %88 = arith.index_cast %86 : i32 to index
    %c0_38 = arith.constant 0 : index
    %89 = vector.load %arg8[%88, %c0_38] : memref<64x96xf32, #tpu.memory_space<vmem>>, vector<8x96xf32>
    %cst_39 = arith.constant dense<0.000000e+00> : vector<8x96xf32>
    %90 = tpu.matmul %87, %9, %cst_39 {dimension_numbers = #tpu.dot_dimension_numbers<[1], [0], [0], [1], [0, 0, 1, 1], [], []>} : vector<8x32xf32>, vector<32x96xf32>, vector<8x96xf32> -> vector<8x96xf32>
    %91 = vector.broadcast %10 : vector<1x96xf32> to vector<8x96xf32>
    %92 = arith.addf %90, %91 : vector<8x96xf32>
    %93 = vector.extract_strided_slice %89 {offsets = [0, 0], sizes = [8, 32], strides = [1, 1]} : vector<8x96xf32> to vector<8x32xf32>
    %94 = vector.extract_strided_slice %92 {offsets = [0, 0], sizes = [8, 32], strides = [1, 1]} : vector<8x96xf32> to vector<8x32xf32>
    %95 = arith.addf %93, %94 : vector<8x32xf32>
    %96 = arith.negf %95 : vector<8x32xf32>
    %97 = math.exp %96 : vector<8x32xf32>
    %cst_40 = arith.constant 1.000000e+00 : f32
    %98 = vector.broadcast %cst_40 : f32 to vector<8x32xf32>
    %99 = arith.addf %98, %97 : vector<8x32xf32>
    %100 = arith.divf %98, %99 : vector<8x32xf32>
    %101 = vector.extract_strided_slice %89 {offsets = [0, 32], sizes = [8, 32], strides = [1, 1]} : vector<8x96xf32> to vector<8x32xf32>
    %102 = vector.extract_strided_slice %92 {offsets = [0, 32], sizes = [8, 32], strides = [1, 1]} : vector<8x96xf32> to vector<8x32xf32>
    %103 = arith.addf %101, %102 : vector<8x32xf32>
    %104 = arith.negf %103 : vector<8x32xf32>
    %105 = math.exp %104 : vector<8x32xf32>
    %cst_41 = arith.constant 1.000000e+00 : f32
    %106 = vector.broadcast %cst_41 : f32 to vector<8x32xf32>
    %107 = arith.addf %106, %105 : vector<8x32xf32>
    %108 = arith.divf %106, %107 : vector<8x32xf32>
    %109 = vector.extract_strided_slice %89 {offsets = [0, 64], sizes = [8, 32], strides = [1, 1]} : vector<8x96xf32> to vector<8x32xf32>
    %110 = vector.extract_strided_slice %92 {offsets = [0, 64], sizes = [8, 32], strides = [1, 1]} : vector<8x96xf32> to vector<8x32xf32>
    %111 = arith.mulf %100, %110 : vector<8x32xf32>
    %112 = arith.addf %109, %111 : vector<8x32xf32>
    %113 = math.tanh %112 : vector<8x32xf32>
    %cst_42 = arith.constant 1.000000e+00 : f32
    %114 = vector.broadcast %cst_42 : f32 to vector<8x32xf32>
    %115 = arith.subf %114, %108 : vector<8x32xf32>
    %116 = arith.mulf %115, %113 : vector<8x32xf32>
    %117 = arith.mulf %108, %87 : vector<8x32xf32>
    %118 = arith.addf %116, %117 : vector<8x32xf32>
    %c0_43 = arith.constant 0 : index
    %c0_44 = arith.constant 0 : index
    %119 = vector.load %arg9[%c0_43, %c0_44] : memref<8x32xf32, #tpu.memory_space<vmem>>, vector<8x32xf32>
    tpu.vector_store %arg9[%c0_43, %c0_44], %118 {strides = array<i32>} : memref<8x32xf32, #tpu.memory_space<vmem>>, vector<8x32xf32>,
    %120 = arith.index_cast %86 : i32 to index
    %c0_45 = arith.constant 0 : index
    %121 = vector.load %arg6[%120, %c0_45] : memref<64x32xf32, #tpu.memory_space<vmem>>, vector<8x32xf32>
    tpu.vector_store %arg6[%120, %c0_45], %118 {strides = array<i32>} : memref<64x32xf32, #tpu.memory_space<vmem>>, vector<8x32xf32>,
    %c3_i32 = arith.constant 3 : i32
    %c8_i32_46 = arith.constant 8 : i32
    %122 = arith.muli %c3_i32, %c8_i32_46 : i32
    %123 = tpu.assume_multiple %122, 8 : i32
    %c0_47 = arith.constant 0 : index
    %c0_48 = arith.constant 0 : index
    %124 = vector.load %arg9[%c0_47, %c0_48] : memref<8x32xf32, #tpu.memory_space<vmem>>, vector<8x32xf32>
    %125 = arith.index_cast %123 : i32 to index
    %c0_49 = arith.constant 0 : index
    %126 = vector.load %arg8[%125, %c0_49] : memref<64x96xf32, #tpu.memory_space<vmem>>, vector<8x96xf32>
    %cst_50 = arith.constant dense<0.000000e+00> : vector<8x96xf32>
    %127 = tpu.matmul %124, %9, %cst_50 {dimension_numbers = #tpu.dot_dimension_numbers<[1], [0], [0], [1], [0, 0, 1, 1], [], []>} : vector<8x32xf32>, vector<32x96xf32>, vector<8x96xf32> -> vector<8x96xf32>
    %128 = vector.broadcast %10 : vector<1x96xf32> to vector<8x96xf32>
    %129 = arith.addf %127, %128 : vector<8x96xf32>
    %130 = vector.extract_strided_slice %126 {offsets = [0, 0], sizes = [8, 32], strides = [1, 1]} : vector<8x96xf32> to vector<8x32xf32>
    %131 = vector.extract_strided_slice %129 {offsets = [0, 0], sizes = [8, 32], strides = [1, 1]} : vector<8x96xf32> to vector<8x32xf32>
    %132 = arith.addf %130, %131 : vector<8x32xf32>
    %133 = arith.negf %132 : vector<8x32xf32>
    %134 = math.exp %133 : vector<8x32xf32>
    %cst_51 = arith.constant 1.000000e+00 : f32
    %135 = vector.broadcast %cst_51 : f32 to vector<8x32xf32>
    %136 = arith.addf %135, %134 : vector<8x32xf32>
    %137 = arith.divf %135, %136 : vector<8x32xf32>
    %138 = vector.extract_strided_slice %126 {offsets = [0, 32], sizes = [8, 32], strides = [1, 1]} : vector<8x96xf32> to vector<8x32xf32>
    %139 = vector.extract_strided_slice %129 {offsets = [0, 32], sizes = [8, 32], strides = [1, 1]} : vector<8x96xf32> to vector<8x32xf32>
    %140 = arith.addf %138, %139 : vector<8x32xf32>
    %141 = arith.negf %140 : vector<8x32xf32>
    %142 = math.exp %141 : vector<8x32xf32>
    %cst_52 = arith.constant 1.000000e+00 : f32
    %143 = vector.broadcast %cst_52 : f32 to vector<8x32xf32>
    %144 = arith.addf %143, %142 : vector<8x32xf32>
    %145 = arith.divf %143, %144 : vector<8x32xf32>
    %146 = vector.extract_strided_slice %126 {offsets = [0, 64], sizes = [8, 32], strides = [1, 1]} : vector<8x96xf32> to vector<8x32xf32>
    %147 = vector.extract_strided_slice %129 {offsets = [0, 64], sizes = [8, 32], strides = [1, 1]} : vector<8x96xf32> to vector<8x32xf32>
    %148 = arith.mulf %137, %147 : vector<8x32xf32>
    %149 = arith.addf %146, %148 : vector<8x32xf32>
    %150 = math.tanh %149 : vector<8x32xf32>
    %cst_53 = arith.constant 1.000000e+00 : f32
    %151 = vector.broadcast %cst_53 : f32 to vector<8x32xf32>
    %152 = arith.subf %151, %145 : vector<8x32xf32>
    %153 = arith.mulf %152, %150 : vector<8x32xf32>
    %154 = arith.mulf %145, %124 : vector<8x32xf32>
    %155 = arith.addf %153, %154 : vector<8x32xf32>
    %c0_54 = arith.constant 0 : index
    %c0_55 = arith.constant 0 : index
    %156 = vector.load %arg9[%c0_54, %c0_55] : memref<8x32xf32, #tpu.memory_space<vmem>>, vector<8x32xf32>
    tpu.vector_store %arg9[%c0_54, %c0_55], %155 {strides = array<i32>} : memref<8x32xf32, #tpu.memory_space<vmem>>, vector<8x32xf32>,
    %157 = arith.index_cast %123 : i32 to index
    %c0_56 = arith.constant 0 : index
    %158 = vector.load %arg6[%157, %c0_56] : memref<64x32xf32, #tpu.memory_space<vmem>>, vector<8x32xf32>
    tpu.vector_store %arg6[%157, %c0_56], %155 {strides = array<i32>} : memref<64x32xf32, #tpu.memory_space<vmem>>, vector<8x32xf32>,
    %c4_i32 = arith.constant 4 : i32
    %c8_i32_57 = arith.constant 8 : i32
    %159 = arith.muli %c4_i32, %c8_i32_57 : i32
    %160 = tpu.assume_multiple %159, 8 : i32
    %c0_58 = arith.constant 0 : index
    %c0_59 = arith.constant 0 : index
    %161 = vector.load %arg9[%c0_58, %c0_59] : memref<8x32xf32, #tpu.memory_space<vmem>>, vector<8x32xf32>
    %162 = arith.index_cast %160 : i32 to index
    %c0_60 = arith.constant 0 : index
    %163 = vector.load %arg8[%162, %c0_60] : memref<64x96xf32, #tpu.memory_space<vmem>>, vector<8x96xf32>
    %cst_61 = arith.constant dense<0.000000e+00> : vector<8x96xf32>
    %164 = tpu.matmul %161, %9, %cst_61 {dimension_numbers = #tpu.dot_dimension_numbers<[1], [0], [0], [1], [0, 0, 1, 1], [], []>} : vector<8x32xf32>, vector<32x96xf32>, vector<8x96xf32> -> vector<8x96xf32>
    %165 = vector.broadcast %10 : vector<1x96xf32> to vector<8x96xf32>
    %166 = arith.addf %164, %165 : vector<8x96xf32>
    %167 = vector.extract_strided_slice %163 {offsets = [0, 0], sizes = [8, 32], strides = [1, 1]} : vector<8x96xf32> to vector<8x32xf32>
    %168 = vector.extract_strided_slice %166 {offsets = [0, 0], sizes = [8, 32], strides = [1, 1]} : vector<8x96xf32> to vector<8x32xf32>
    %169 = arith.addf %167, %168 : vector<8x32xf32>
    %170 = arith.negf %169 : vector<8x32xf32>
    %171 = math.exp %170 : vector<8x32xf32>
    %cst_62 = arith.constant 1.000000e+00 : f32
    %172 = vector.broadcast %cst_62 : f32 to vector<8x32xf32>
    %173 = arith.addf %172, %171 : vector<8x32xf32>
    %174 = arith.divf %172, %173 : vector<8x32xf32>
    %175 = vector.extract_strided_slice %163 {offsets = [0, 32], sizes = [8, 32], strides = [1, 1]} : vector<8x96xf32> to vector<8x32xf32>
    %176 = vector.extract_strided_slice %166 {offsets = [0, 32], sizes = [8, 32], strides = [1, 1]} : vector<8x96xf32> to vector<8x32xf32>
    %177 = arith.addf %175, %176 : vector<8x32xf32>
    %178 = arith.negf %177 : vector<8x32xf32>
    %179 = math.exp %178 : vector<8x32xf32>
    %cst_63 = arith.constant 1.000000e+00 : f32
    %180 = vector.broadcast %cst_63 : f32 to vector<8x32xf32>
    %181 = arith.addf %180, %179 : vector<8x32xf32>
    %182 = arith.divf %180, %181 : vector<8x32xf32>
    %183 = vector.extract_strided_slice %163 {offsets = [0, 64], sizes = [8, 32], strides = [1, 1]} : vector<8x96xf32> to vector<8x32xf32>
    %184 = vector.extract_strided_slice %166 {offsets = [0, 64], sizes = [8, 32], strides = [1, 1]} : vector<8x96xf32> to vector<8x32xf32>
    %185 = arith.mulf %174, %184 : vector<8x32xf32>
    %186 = arith.addf %183, %185 : vector<8x32xf32>
    %187 = math.tanh %186 : vector<8x32xf32>
    %cst_64 = arith.constant 1.000000e+00 : f32
    %188 = vector.broadcast %cst_64 : f32 to vector<8x32xf32>
    %189 = arith.subf %188, %182 : vector<8x32xf32>
    %190 = arith.mulf %189, %187 : vector<8x32xf32>
    %191 = arith.mulf %182, %161 : vector<8x32xf32>
    %192 = arith.addf %190, %191 : vector<8x32xf32>
    %c0_65 = arith.constant 0 : index
    %c0_66 = arith.constant 0 : index
    %193 = vector.load %arg9[%c0_65, %c0_66] : memref<8x32xf32, #tpu.memory_space<vmem>>, vector<8x32xf32>
    tpu.vector_store %arg9[%c0_65, %c0_66], %192 {strides = array<i32>} : memref<8x32xf32, #tpu.memory_space<vmem>>, vector<8x32xf32>,
    %194 = arith.index_cast %160 : i32 to index
    %c0_67 = arith.constant 0 : index
    %195 = vector.load %arg6[%194, %c0_67] : memref<64x32xf32, #tpu.memory_space<vmem>>, vector<8x32xf32>
    tpu.vector_store %arg6[%194, %c0_67], %192 {strides = array<i32>} : memref<64x32xf32, #tpu.memory_space<vmem>>, vector<8x32xf32>,
    %c5_i32 = arith.constant 5 : i32
    %c8_i32_68 = arith.constant 8 : i32
    %196 = arith.muli %c5_i32, %c8_i32_68 : i32
    %197 = tpu.assume_multiple %196, 8 : i32
    %c0_69 = arith.constant 0 : index
    %c0_70 = arith.constant 0 : index
    %198 = vector.load %arg9[%c0_69, %c0_70] : memref<8x32xf32, #tpu.memory_space<vmem>>, vector<8x32xf32>
    %199 = arith.index_cast %197 : i32 to index
    %c0_71 = arith.constant 0 : index
    %200 = vector.load %arg8[%199, %c0_71] : memref<64x96xf32, #tpu.memory_space<vmem>>, vector<8x96xf32>
    %cst_72 = arith.constant dense<0.000000e+00> : vector<8x96xf32>
    %201 = tpu.matmul %198, %9, %cst_72 {dimension_numbers = #tpu.dot_dimension_numbers<[1], [0], [0], [1], [0, 0, 1, 1], [], []>} : vector<8x32xf32>, vector<32x96xf32>, vector<8x96xf32> -> vector<8x96xf32>
    %202 = vector.broadcast %10 : vector<1x96xf32> to vector<8x96xf32>
    %203 = arith.addf %201, %202 : vector<8x96xf32>
    %204 = vector.extract_strided_slice %200 {offsets = [0, 0], sizes = [8, 32], strides = [1, 1]} : vector<8x96xf32> to vector<8x32xf32>
    %205 = vector.extract_strided_slice %203 {offsets = [0, 0], sizes = [8, 32], strides = [1, 1]} : vector<8x96xf32> to vector<8x32xf32>
    %206 = arith.addf %204, %205 : vector<8x32xf32>
    %207 = arith.negf %206 : vector<8x32xf32>
    %208 = math.exp %207 : vector<8x32xf32>
    %cst_73 = arith.constant 1.000000e+00 : f32
    %209 = vector.broadcast %cst_73 : f32 to vector<8x32xf32>
    %210 = arith.addf %209, %208 : vector<8x32xf32>
    %211 = arith.divf %209, %210 : vector<8x32xf32>
    %212 = vector.extract_strided_slice %200 {offsets = [0, 32], sizes = [8, 32], strides = [1, 1]} : vector<8x96xf32> to vector<8x32xf32>
    %213 = vector.extract_strided_slice %203 {offsets = [0, 32], sizes = [8, 32], strides = [1, 1]} : vector<8x96xf32> to vector<8x32xf32>
    %214 = arith.addf %212, %213 : vector<8x32xf32>
    %215 = arith.negf %214 : vector<8x32xf32>
    %216 = math.exp %215 : vector<8x32xf32>
    %cst_74 = arith.constant 1.000000e+00 : f32
    %217 = vector.broadcast %cst_74 : f32 to vector<8x32xf32>
    %218 = arith.addf %217, %216 : vector<8x32xf32>
    %219 = arith.divf %217, %218 : vector<8x32xf32>
    %220 = vector.extract_strided_slice %200 {offsets = [0, 64], sizes = [8, 32], strides = [1, 1]} : vector<8x96xf32> to vector<8x32xf32>
    %221 = vector.extract_strided_slice %203 {offsets = [0, 64], sizes = [8, 32], strides = [1, 1]} : vector<8x96xf32> to vector<8x32xf32>
    %222 = arith.mulf %211, %221 : vector<8x32xf32>
    %223 = arith.addf %220, %222 : vector<8x32xf32>
    %224 = math.tanh %223 : vector<8x32xf32>
    %cst_75 = arith.constant 1.000000e+00 : f32
    %225 = vector.broadcast %cst_75 : f32 to vector<8x32xf32>
    %226 = arith.subf %225, %219 : vector<8x32xf32>
    %227 = arith.mulf %226, %224 : vector<8x32xf32>
    %228 = arith.mulf %219, %198 : vector<8x32xf32>
    %229 = arith.addf %227, %228 : vector<8x32xf32>
    %c0_76 = arith.constant 0 : index
    %c0_77 = arith.constant 0 : index
    %230 = vector.load %arg9[%c0_76, %c0_77] : memref<8x32xf32, #tpu.memory_space<vmem>>, vector<8x32xf32>
    tpu.vector_store %arg9[%c0_76, %c0_77], %229 {strides = array<i32>} : memref<8x32xf32, #tpu.memory_space<vmem>>, vector<8x32xf32>,
    %231 = arith.index_cast %197 : i32 to index
    %c0_78 = arith.constant 0 : index
    %232 = vector.load %arg6[%231, %c0_78] : memref<64x32xf32, #tpu.memory_space<vmem>>, vector<8x32xf32>
    tpu.vector_store %arg6[%231, %c0_78], %229 {strides = array<i32>} : memref<64x32xf32, #tpu.memory_space<vmem>>, vector<8x32xf32>,
    %c6_i32 = arith.constant 6 : i32
    %c8_i32_79 = arith.constant 8 : i32
    %233 = arith.muli %c6_i32, %c8_i32_79 : i32
    %234 = tpu.assume_multiple %233, 8 : i32
    %c0_80 = arith.constant 0 : index
    %c0_81 = arith.constant 0 : index
    %235 = vector.load %arg9[%c0_80, %c0_81] : memref<8x32xf32, #tpu.memory_space<vmem>>, vector<8x32xf32>
    %236 = arith.index_cast %234 : i32 to index
    %c0_82 = arith.constant 0 : index
    %237 = vector.load %arg8[%236, %c0_82] : memref<64x96xf32, #tpu.memory_space<vmem>>, vector<8x96xf32>
    %cst_83 = arith.constant dense<0.000000e+00> : vector<8x96xf32>
    %238 = tpu.matmul %235, %9, %cst_83 {dimension_numbers = #tpu.dot_dimension_numbers<[1], [0], [0], [1], [0, 0, 1, 1], [], []>} : vector<8x32xf32>, vector<32x96xf32>, vector<8x96xf32> -> vector<8x96xf32>
    %239 = vector.broadcast %10 : vector<1x96xf32> to vector<8x96xf32>
    %240 = arith.addf %238, %239 : vector<8x96xf32>
    %241 = vector.extract_strided_slice %237 {offsets = [0, 0], sizes = [8, 32], strides = [1, 1]} : vector<8x96xf32> to vector<8x32xf32>
    %242 = vector.extract_strided_slice %240 {offsets = [0, 0], sizes = [8, 32], strides = [1, 1]} : vector<8x96xf32> to vector<8x32xf32>
    %243 = arith.addf %241, %242 : vector<8x32xf32>
    %244 = arith.negf %243 : vector<8x32xf32>
    %245 = math.exp %244 : vector<8x32xf32>
    %cst_84 = arith.constant 1.000000e+00 : f32
    %246 = vector.broadcast %cst_84 : f32 to vector<8x32xf32>
    %247 = arith.addf %246, %245 : vector<8x32xf32>
    %248 = arith.divf %246, %247 : vector<8x32xf32>
    %249 = vector.extract_strided_slice %237 {offsets = [0, 32], sizes = [8, 32], strides = [1, 1]} : vector<8x96xf32> to vector<8x32xf32>
    %250 = vector.extract_strided_slice %240 {offsets = [0, 32], sizes = [8, 32], strides = [1, 1]} : vector<8x96xf32> to vector<8x32xf32>
    %251 = arith.addf %249, %250 : vector<8x32xf32>
    %252 = arith.negf %251 : vector<8x32xf32>
    %253 = math.exp %252 : vector<8x32xf32>
    %cst_85 = arith.constant 1.000000e+00 : f32
    %254 = vector.broadcast %cst_85 : f32 to vector<8x32xf32>
    %255 = arith.addf %254, %253 : vector<8x32xf32>
    %256 = arith.divf %254, %255 : vector<8x32xf32>
    %257 = vector.extract_strided_slice %237 {offsets = [0, 64], sizes = [8, 32], strides = [1, 1]} : vector<8x96xf32> to vector<8x32xf32>
    %258 = vector.extract_strided_slice %240 {offsets = [0, 64], sizes = [8, 32], strides = [1, 1]} : vector<8x96xf32> to vector<8x32xf32>
    %259 = arith.mulf %248, %258 : vector<8x32xf32>
    %260 = arith.addf %257, %259 : vector<8x32xf32>
    %261 = math.tanh %260 : vector<8x32xf32>
    %cst_86 = arith.constant 1.000000e+00 : f32
    %262 = vector.broadcast %cst_86 : f32 to vector<8x32xf32>
    %263 = arith.subf %262, %256 : vector<8x32xf32>
    %264 = arith.mulf %263, %261 : vector<8x32xf32>
    %265 = arith.mulf %256, %235 : vector<8x32xf32>
    %266 = arith.addf %264, %265 : vector<8x32xf32>
    %c0_87 = arith.constant 0 : index
    %c0_88 = arith.constant 0 : index
    %267 = vector.load %arg9[%c0_87, %c0_88] : memref<8x32xf32, #tpu.memory_space<vmem>>, vector<8x32xf32>
    tpu.vector_store %arg9[%c0_87, %c0_88], %266 {strides = array<i32>} : memref<8x32xf32, #tpu.memory_space<vmem>>, vector<8x32xf32>,
    %268 = arith.index_cast %234 : i32 to index
    %c0_89 = arith.constant 0 : index
    %269 = vector.load %arg6[%268, %c0_89] : memref<64x32xf32, #tpu.memory_space<vmem>>, vector<8x32xf32>
    tpu.vector_store %arg6[%268, %c0_89], %266 {strides = array<i32>} : memref<64x32xf32, #tpu.memory_space<vmem>>, vector<8x32xf32>,
    %c7_i32 = arith.constant 7 : i32
    %c8_i32_90 = arith.constant 8 : i32
    %270 = arith.muli %c7_i32, %c8_i32_90 : i32
    %271 = tpu.assume_multiple %270, 8 : i32
    %c0_91 = arith.constant 0 : index
    %c0_92 = arith.constant 0 : index
    %272 = vector.load %arg9[%c0_91, %c0_92] : memref<8x32xf32, #tpu.memory_space<vmem>>, vector<8x32xf32>
    %273 = arith.index_cast %271 : i32 to index
    %c0_93 = arith.constant 0 : index
    %274 = vector.load %arg8[%273, %c0_93] : memref<64x96xf32, #tpu.memory_space<vmem>>, vector<8x96xf32>
    %cst_94 = arith.constant dense<0.000000e+00> : vector<8x96xf32>
    %275 = tpu.matmul %272, %9, %cst_94 {dimension_numbers = #tpu.dot_dimension_numbers<[1], [0], [0], [1], [0, 0, 1, 1], [], []>} : vector<8x32xf32>, vector<32x96xf32>, vector<8x96xf32> -> vector<8x96xf32>
    %276 = vector.broadcast %10 : vector<1x96xf32> to vector<8x96xf32>
    %277 = arith.addf %275, %276 : vector<8x96xf32>
    %278 = vector.extract_strided_slice %274 {offsets = [0, 0], sizes = [8, 32], strides = [1, 1]} : vector<8x96xf32> to vector<8x32xf32>
    %279 = vector.extract_strided_slice %277 {offsets = [0, 0], sizes = [8, 32], strides = [1, 1]} : vector<8x96xf32> to vector<8x32xf32>
    %280 = arith.addf %278, %279 : vector<8x32xf32>
    %281 = arith.negf %280 : vector<8x32xf32>
    %282 = math.exp %281 : vector<8x32xf32>
    %cst_95 = arith.constant 1.000000e+00 : f32
    %283 = vector.broadcast %cst_95 : f32 to vector<8x32xf32>
    %284 = arith.addf %283, %282 : vector<8x32xf32>
    %285 = arith.divf %283, %284 : vector<8x32xf32>
    %286 = vector.extract_strided_slice %274 {offsets = [0, 32], sizes = [8, 32], strides = [1, 1]} : vector<8x96xf32> to vector<8x32xf32>
    %287 = vector.extract_strided_slice %277 {offsets = [0, 32], sizes = [8, 32], strides = [1, 1]} : vector<8x96xf32> to vector<8x32xf32>
    %288 = arith.addf %286, %287 : vector<8x32xf32>
    %289 = arith.negf %288 : vector<8x32xf32>
    %290 = math.exp %289 : vector<8x32xf32>
    %cst_96 = arith.constant 1.000000e+00 : f32
    %291 = vector.broadcast %cst_96 : f32 to vector<8x32xf32>
    %292 = arith.addf %291, %290 : vector<8x32xf32>
    %293 = arith.divf %291, %292 : vector<8x32xf32>
    %294 = vector.extract_strided_slice %274 {offsets = [0, 64], sizes = [8, 32], strides = [1, 1]} : vector<8x96xf32> to vector<8x32xf32>
    %295 = vector.extract_strided_slice %277 {offsets = [0, 64], sizes = [8, 32], strides = [1, 1]} : vector<8x96xf32> to vector<8x32xf32>
    %296 = arith.mulf %285, %295 : vector<8x32xf32>
    %297 = arith.addf %294, %296 : vector<8x32xf32>
    %298 = math.tanh %297 : vector<8x32xf32>
    %cst_97 = arith.constant 1.000000e+00 : f32
    %299 = vector.broadcast %cst_97 : f32 to vector<8x32xf32>
    %300 = arith.subf %299, %293 : vector<8x32xf32>
    %301 = arith.mulf %300, %298 : vector<8x32xf32>
    %302 = arith.mulf %293, %272 : vector<8x32xf32>
    %303 = arith.addf %301, %302 : vector<8x32xf32>
    %c0_98 = arith.constant 0 : index
    %c0_99 = arith.constant 0 : index
    %304 = vector.load %arg9[%c0_98, %c0_99] : memref<8x32xf32, #tpu.memory_space<vmem>>, vector<8x32xf32>
    tpu.vector_store %arg9[%c0_98, %c0_99], %303 {strides = array<i32>} : memref<8x32xf32, #tpu.memory_space<vmem>>, vector<8x32xf32>,
    %305 = arith.index_cast %271 : i32 to index
    %c0_100 = arith.constant 0 : index
    %306 = vector.load %arg6[%305, %c0_100] : memref<64x32xf32, #tpu.memory_space<vmem>>, vector<8x32xf32>
    tpu.vector_store %arg6[%305, %c0_100], %303 {strides = array<i32>} : memref<64x32xf32, #tpu.memory_space<vmem>>, vector<8x32xf32>,
    %c8_i32_101 = arith.constant 8 : i32
    %c0_102 = arith.constant 0 : index
    %c0_103 = arith.constant 0 : index
    %307 = vector.load %arg9[%c0_102, %c0_103] : memref<8x32xf32, #tpu.memory_space<vmem>>, vector<8x32xf32>
    %c0_104 = arith.constant 0 : index
    %c0_105 = arith.constant 0 : index
    %308 = vector.load %arg7[%c0_104, %c0_105] : memref<8x32xf32, #tpu.memory_space<vmem>>, vector<8x32xf32>
    tpu.vector_store %arg7[%c0_104, %c0_105], %307 {strides = array<i32>} : memref<8x32xf32, #tpu.memory_space<vmem>>, vector<8x32xf32>,
    return
  }
  func.func @transform_0(%arg0: i32) -> (i32, i32) {
    %c0_i32 = arith.constant 0 : i32
    %c0_i32_0 = arith.constant 0 : i32
    %c0_i32_1 = arith.constant 0 : i32
    return %c0_i32, %c0_i32_0 : i32, i32
  }
  func.func @transform_1(%arg0: i32) -> (i32, i32) {
    %c0_i32 = arith.constant 0 : i32
    %c0_i32_0 = arith.constant 0 : i32
    %c0_i32_1 = arith.constant 0 : i32
    return %c0_i32, %c0_i32_0 : i32, i32
  }
  func.func @transform_2(%arg0: i32) -> (i32, i32) {
    %c0_i32 = arith.constant 0 : i32
    %c0_i32_0 = arith.constant 0 : i32
    %c0_i32_1 = arith.constant 0 : i32
    return %c0_i32, %c0_i32_0 : i32, i32
  }
  func.func @transform_3(%arg0: i32) -> (i32, i32) {
    %c0_i32 = arith.constant 0 : i32
    %c0_i32_0 = arith.constant 0 : i32
    %c0_i32_1 = arith.constant 0 : i32
    return %c0_i32, %c0_i32_0 : i32, i32
  }
  func.func @transform_4(%arg0: i32) -> (i32, i32) {
    %c0_i32 = arith.constant 0 : i32
    %c0_i32_0 = arith.constant 0 : i32
    %c0_i32_1 = arith.constant 0 : i32
    return %c0_i32, %c0_i32_0 : i32, i32
  }
  func.func @transform_5(%arg0: i32) -> (i32, i32) {
    %c0_i32 = arith.constant 0 : i32
    %c0_i32_0 = arith.constant 0 : i32
    %c0_i32_1 = arith.constant 0 : i32
    return %c0_i32, %c0_i32_0 : i32, i32
  }
  func.func @transform_6(%arg0: i32) -> (i32, i32) {
    %c0_i32 = arith.constant 0 : i32
    %c0_i32_0 = arith.constant 0 : i32
    %c0_i32_1 = arith.constant 0 : i32
    return %c0_i32, %c0_i32_0 : i32, i32
  }
}

</mosaic_0001>

<llo_original>
// kernel: tpu_custom_call.1
$region0: #{tpu_custom_call.1}
  #allocation0 [shape = 'u32[]', space=smem, size = 0x4, offset = 0x4, fixed_abs, tag = 'smem constant byte address 0x4 - core index']
  #allocation1 [shape = 'u32[144,128]{1,0:T(1,128)}', space=vmem, size = 0x12000, scoped, tag = 'internal scratch']
  #allocation2 [shape = 'f32[64,96]{1,0:T(8,128)}', space=vmem, size = 0x8000, scoped, tag = 'scratch operand']
  #allocation3 [shape = 'f32[8,32]{1,0:T(8,128)}', space=vmem, size = 0x1000, scoped, tag = 'scratch operand']
  %s0 = inlined_call_operand.vmem [shape: f32[64,4], index: 0, kind: input, shape index: {}]
  %s1 = inlined_call_operand.vmem [shape: f32[4,96], index: 1, kind: input, shape index: {}]
  %s2 = inlined_call_operand.vmem [shape: f32[32,96], index: 2, kind: input, shape index: {}]
  %s3 = inlined_call_operand.vmem [shape: f32[1,96], index: 3, kind: input, shape index: {}]
  %s4 = inlined_call_operand.vmem [shape: f32[1,96], index: 4, kind: input, shape index: {}]
  %s5 = inlined_call_operand.vmem [shape: f32[64,32], index: 5, kind: output, shape index: {0}]
  %s6 = inlined_call_operand.hbm [shape: f32[8,32], index: 6, kind: output, shape index: {1}]
  %7 = xla_tuple %s5, %s6
  %s8 = sld [smem:[#allocation0]]
  $region38: #{tpu_custom_call.1} parent=0
    _
  %s10 = ssub.s32 1, %s8
  %s11 = scalar_select 0, %s10, %s8
  $region1: #{tpu_custom_call.1} parent=0
    #allocation4 [shape = 'u8[4096]{0}', space=vmem, size = 0x1000, scoped, tag = 'output window, operand 1, single buffered']
    #allocation5 [shape = 's32[1]{0}', space=sflag, size = 0x4, scoped, tag = 'scoped memory for tpu_custom_call.1']
    %12 = vsyncpa [#allocation5], 0
    // Predicated region
    $region2: #{tpu_custom_call.1} parent=1 // pred_check
      _
    $region3: #{tpu_custom_call.1} parent=1 // pred_check_branch
      %14 = sbr.rel (0) target = $region5
    $region4: #{tpu_custom_call.1} parent=1 // pred_region
      _
    $region5: #{tpu_custom_call.1} parent=1 // pred_fallthru
      _
    // Predicated region
    $region6: #{tpu_custom_call.1} parent=1 // pred_check
      _
    $region7: #{tpu_custom_call.1} parent=1 // pred_check_branch
      %16 = sbr.rel (0) target = $region9
    $region8: #{tpu_custom_call.1} parent=1 // pred_region
      _
    $region9: #{tpu_custom_call.1} parent=1 // pred_fallthru
      _
    // Predicated region
    $region10: #{tpu_custom_call.1} parent=1 // pred_check
      _
    $region11: #{tpu_custom_call.1} parent=1 // pred_check_branch
      %18 = sbr.rel (0) target = $region13
    $region12: #{tpu_custom_call.1} parent=1 // pred_region
      _
    $region13: #{tpu_custom_call.1} parent=1 // pred_fallthru
      _
    // Predicated region
    $region14: #{tpu_custom_call.1} parent=1 // pred_check
      _
    $region15: #{tpu_custom_call.1} parent=1 // pred_check_branch
      %20 = sbr.rel (0) target = $region17
    $region16: #{tpu_custom_call.1} parent=1 // pred_region
      _
    $region17: #{tpu_custom_call.1} parent=1 // pred_fallthru
      _
    // Predicated region
    $region18: #{tpu_custom_call.1} parent=1 // pred_check
      _
    $region19: #{tpu_custom_call.1} parent=1 // pred_check_branch
      %22 = sbr.rel (0) target = $region21
    $region20: #{tpu_custom_call.1} parent=1 // pred_region
      _
    $region21: #{tpu_custom_call.1} parent=1 // pred_fallthru
      _
    %v23 = vld [vmem:[%s0] sm:$0xff]
    %v24 = vld [vmem:[%s0 + $0x8] sm:$0xff]
    %v25 = vld [vmem:[%s0 + $0x10] sm:$0xff]
    %v26 = vld [vmem:[%s0 + $0x18] sm:$0xff]
    %v27 = vld [vmem:[%s0 + $0x20] sm:$0xff]
    %v28 = vld [vmem:[%s0 + $0x28] sm:$0xff]
    %v29 = vld [vmem:[%s0 + $0x30] sm:$0xff]
    %v30 = vld [vmem:[%s0 + $0x38] sm:$0xff]
    %v31 = vld [vmem:[%s1] sm:$0xf]
    %v32 = vld [vmem:[%s3] sm:$0x1]
    %v34 = vlaneseq
    %v35 = vshrl.u32 %v34, 7
    %v36 = vsub.s32 0, %v35
    %v37 = vrot.slane %v32, %v36
    %vm39 = vcmask 31744
    %v41 = vsel %vm39, %v23, 0
    %v44 = vsel %vm39, %v24, 0
    %v47 = vsel %vm39, %v25, 0
    %v50 = vsel %vm39, %v26, 0
    %v53 = vsel %vm39, %v27, 0
    %v56 = vsel %vm39, %v28, 0
    %v59 = vsel %vm39, %v29, 0
    %v62 = vsel %vm39, %v30, 0
    %vm64 = vcmask 1043456
    %v66 = vsel %vm64, %v31, 0
    %68 = vmatprep.subr.mxu0 0.0
    %69 = vmatpush1.msra.mxu0 0.0
    %70 = vmatprep.subr.mxu0 0.0
    %71 = vmatpush1.msra.mxu0 0.0
    %72 = vmatprep.subr.mxu0 0.0
    %73 = vmatpush1.msra.mxu0 0.0
    %74 = vmatprep.subr.mxu0 0.0
    %75 = vmatpush1.msra.mxu0 0.0
    %76 = vmatprep.subr.mxu0 0.0
    %77 = vmatpush1.msra.mxu0 0.0
    %78 = vmatprep.subr.mxu0 0.0
    %79 = vmatpush1.msra.mxu0 0.0
    %80 = vmatprep.subr.mxu0 0.0
    %81 = vmatpush1.msra.mxu0 0.0
    %82 = vmatprep.subr.mxu0 0.0
    %83 = vmatpush1.msra.mxu0 0.0
    %84 = vmatprep.subr.mxu0 0.0
    %85 = vmatpush1.msra.mxu0 0.0
    %86 = vmatprep.subr.mxu0 0.0
    %87 = vmatpush1.msra.mxu0 0.0
    %88 = vmatprep.subr.mxu0 0.0
    %89 = vmatpush1.msra.mxu0 0.0
    %90 = vmatprep.subr.mxu0 0.0
    %91 = vmatpush1.msra.mxu0 0.0
    %92 = vmatprep.subr.mxu0 0.0
    %93 = vmatpush1.msra.mxu0 0.0
    %94 = vmatprep.subr.mxu0 0.0
    %95 = vmatpush1.msra.mxu0 0.0
    %96 = vmatprep.subr.mxu0 0.0
    %97 = vmatpush1.msra.mxu0 0.0
    %98 = vmatprep.subr.mxu0 0.0
    %99 = vmatpush1.msra.mxu0 %v66
    %100 = vmatprep.subr.mxu0 0.0
    %101 = vmatpush2.msra.mxu0 0.0
    %102 = vmatprep.subr.mxu0 0.0
    %103 = vmatpush2.msra.mxu0 0.0
    %104 = vmatprep.subr.mxu0 0.0
    %105 = vmatpush2.msra.mxu0 0.0
    %106 = vmatprep.subr.mxu0 0.0
    %107 = vmatpush2.msra.mxu0 0.0
    %108 = vmatprep.subr.mxu0 0.0
    %109 = vmatpush2.msra.mxu0 0.0
    %110 = vmatprep.subr.mxu0 0.0
    %111 = vmatpush2.msra.mxu0 0.0
    %112 = vmatprep.subr.mxu0 0.0
    %113 = vmatpush2.msra.mxu0 0.0
    %114 = vmatprep.subr.mxu0 0.0
    %115 = vmatpush2.msra.mxu0 0.0
    %116 = vmatprep.subr.mxu0 0.0
    %117 = vmatpush2.msra.mxu0 0.0
    %118 = vmatprep.subr.mxu0 0.0
    %119 = vmatpush2.msra.mxu0 0.0
    %120 = vmatprep.subr.mxu0 0.0
    %121 = vmatpush2.msra.mxu0 0.0
    %122 = vmatprep.subr.mxu0 0.0
    %123 = vmatpush2.msra.mxu0 0.0
    %124 = vmatprep.subr.mxu0 0.0
    %125 = vmatpush2.msra.mxu0 0.0
    %126 = vmatprep.subr.mxu0 0.0
    %127 = vmatpush2.msra.mxu0 0.0
    %128 = vmatprep.subr.mxu0 0.0
    %129 = vmatpush2.msra.mxu0 0.0
    %130 = vmatprep.subr.mxu0 0.0
    %131 = vmatpush2.msra.mxu0 0.0
    %132 = vmatprep.mubr.f32.mxu0 0.0
    %133 = vmatmul.mubr.f32.gmra.mxu0 %v41
    %v134 = vpop.f32.mrf.mxu0
    %v135 = vadd.f32 %v37, %v134
    %v136 = vpop.f32.mrf.mxu0
    %137 = vmatprep.mubr.f32.mxu0 0.0
    %138 = vmatmul.mubr.f32.gmra.mxu0 %v44
    %v139 = vpop.f32.mrf.mxu0
    %v140 = vadd.f32 %v37, %v139
    %v141 = vpop.f32.mrf.mxu0
    %142 = vmatprep.mubr.f32.mxu0 0.0
    %143 = vmatmul.mubr.f32.gmra.mxu0 %v47
    %v144 = vpop.f32.mrf.mxu0
    %v145 = vadd.f32 %v37, %v144
    %v146 = vpop.f32.mrf.mxu0
    %147 = vmatprep.mubr.f32.mxu0 0.0
    %148 = vmatmul.mubr.f32.gmra.mxu0 %v50
    %v149 = vpop.f32.mrf.mxu0
    %v150 = vadd.f32 %v37, %v149
    %v151 = vpop.f32.mrf.mxu0
    %152 = vmatprep.mubr.f32.mxu0 0.0
    %153 = vmatmul.mubr.f32.gmra.mxu0 %v53
    %v154 = vpop.f32.mrf.mxu0
    %v155 = vadd.f32 %v37, %v154
    %v156 = vpop.f32.mrf.mxu0
    %157 = vmatprep.mubr.f32.mxu0 0.0
    %158 = vmatmul.mubr.f32.gmra.mxu0 %v56
    %v159 = vpop.f32.mrf.mxu0
    %v160 = vadd.f32 %v37, %v159
    %v161 = vpop.f32.mrf.mxu0
    %162 = vmatprep.mubr.f32.mxu0 0.0
    %163 = vmatmul.mubr.f32.gmra.mxu0 %v59
    %v164 = vpop.f32.mrf.mxu0
    %v165 = vadd.f32 %v37, %v164
    %v166 = vpop.f32.mrf.mxu0
    %167 = vmatprep.mubr.f32.mxu0 0.0
    %168 = vmatmul.mubr.f32.gmra.mxu0 %v62
    %v169 = vpop.f32.mrf.mxu0
    %v170 = vadd.f32 %v37, %v169
    %v171 = vpop.f32.mrf.mxu0
    %172 = vdwg.mxu0
    %vm173 = vcmask 785408
    %174 = vst.msk [vmem:[#allocation2] sm:$0xff] %vm173, %v135
    %175 = vst.msk [vmem:[#allocation2 + $0x8] sm:$0xff] %vm173, %v140
    %176 = vst.msk [vmem:[#allocation2 + $0x10] sm:$0xff] %vm173, %v145
    %177 = vst.msk [vmem:[#allocation2 + $0x18] sm:$0xff] %vm173, %v150
    %178 = vst.msk [vmem:[#allocation2 + $0x20] sm:$0xff] %vm173, %v155
    %179 = vst.msk [vmem:[#allocation2 + $0x28] sm:$0xff] %vm173, %v160
    %180 = vst.msk [vmem:[#allocation2 + $0x30] sm:$0xff] %vm173, %v165
    %181 = vst.msk [vmem:[#allocation2 + $0x38] sm:$0xff] %vm173, %v170
    %vm182 = vcmask 261120
    %183 = vst.msk [vmem:[#allocation3] sm:$0xff] %vm182, 0.0
    %v184 = vld [vmem:[%s2] sm:$0xff]
    %v185 = vld [vmem:[%s2 + $0x8] sm:$0xff]
    %v186 = vld [vmem:[%s2 + $0x10] sm:$0xff]
    %v187 = vld [vmem:[%s2 + $0x18] sm:$0xff]
    %v188 = vld [vmem:[%s4] sm:$0x1]
    %v189 = vld [vmem:[#allocation3] sm:$0xff]
    %v190 = vld [vmem:[#allocation2] sm:$0xff]
    %v192 = vlaneseq
    %v193 = vshrl.u32 %v192, 7
    %v194 = vsub.s32 0, %v193
    %v195 = vrot.slane %v188, %v194
    %v198 = vsel %vm182, %v189, 0
    %200 = vmatprep.subr.mxu0 0.0
    %201 = vmatpush1.msra.mxu0 0.0
    %202 = vmatprep.subr.mxu0 0.0
    %203 = vmatpush1.msra.mxu0 0.0
    %204 = vmatprep.subr.mxu0 0.0
    %205 = vmatpush1.msra.mxu0 0.0
    %206 = vmatprep.subr.mxu0 0.0
    %207 = vmatpush1.msra.mxu0 0.0
    %208 = vmatprep.subr.mxu0 0.0
    %209 = vmatpush1.msra.mxu0 0.0
    %210 = vmatprep.subr.mxu0 0.0
    %211 = vmatpush1.msra.mxu0 0.0
    %212 = vmatprep.subr.mxu0 0.0
    %213 = vmatpush1.msra.mxu0 0.0
    %214 = vmatprep.subr.mxu0 0.0
    %215 = vmatpush1.msra.mxu0 0.0
    %216 = vmatprep.subr.mxu0 0.0
    %217 = vmatpush1.msra.mxu0 0.0
    %218 = vmatprep.subr.mxu0 0.0
    %219 = vmatpush1.msra.mxu0 0.0
    %220 = vmatprep.subr.mxu0 0.0
    %221 = vmatpush1.msra.mxu0 0.0
    %222 = vmatprep.subr.mxu0 0.0
    %223 = vmatpush1.msra.mxu0 0.0
    %224 = vmatprep.subr.mxu0 0.0
    %225 = vmatpush1.msra.mxu0 %v187
    %226 = vmatprep.subr.mxu0 0.0
    %227 = vmatpush1.msra.mxu0 %v186
    %228 = vmatprep.subr.mxu0 0.0
    %229 = vmatpush1.msra.mxu0 %v185
    %230 = vmatprep.subr.mxu0 0.0
    %231 = vmatpush1.msra.mxu0 %v184
    %232 = vmatprep.subr.mxu0 0.0
    %233 = vmatpush2.msra.mxu0 0.0
    %234 = vmatprep.subr.mxu0 0.0
    %235 = vmatpush2.msra.mxu0 0.0
    %236 = vmatprep.subr.mxu0 0.0
    %237 = vmatpush2.msra.mxu0 0.0
    %238 = vmatprep.subr.mxu0 0.0
    %239 = vmatpush2.msra.mxu0 0.0
    %240 = vmatprep.subr.mxu0 0.0
    %241 = vmatpush2.msra.mxu0 0.0
    %242 = vmatprep.subr.mxu0 0.0
    %243 = vmatpush2.msra.mxu0 0.0
    %244 = vmatprep.subr.mxu0 0.0
    %245 = vmatpush2.msra.mxu0 0.0
    %246 = vmatprep.subr.mxu0 0.0
    %247 = vmatpush2.msra.mxu0 0.0
    %248 = vmatprep.subr.mxu0 0.0
    %249 = vmatpush2.msra.mxu0 0.0
    %250 = vmatprep.subr.mxu0 0.0
    %251 = vmatpush2.msra.mxu0 0.0
    %252 = vmatprep.subr.mxu0 0.0
    %253 = vmatpush2.msra.mxu0 0.0
    %254 = vmatprep.subr.mxu0 0.0
    %255 = vmatpush2.msra.mxu0 0.0
    %256 = vmatprep.subr.mxu0 0.0
    %257 = vmatpush2.msra.mxu0 0.0
    %258 = vmatprep.subr.mxu0 0.0
    %259 = vmatpush2.msra.mxu0 0.0
    %260 = vmatprep.subr.mxu0 0.0
    %261 = vmatpush2.msra.mxu0 0.0
    %262 = vmatprep.subr.mxu0 0.0
    %263 = vmatpush2.msra.mxu0 0.0
    %264 = vmatprep.mubr.f32.mxu0 0.0
    %265 = vmatmul.mubr.f32.gmra.mxu0 %v198
    %v266 = vpop.f32.mrf.mxu0
    %v267 = vadd.f32 %v195, %v266
    %v268 = vpop.f32.mrf.mxu0
    %269 = vdwg.mxu0
    %v270 = vadd.f32 %v190, %v267
    %v271 = vxor.u32 %v270, 2147483648
    %v272 = vmul.f32 %v271, 1.442695
    %v273 = vpow.pop %v272
    %v274 = vadd.f32 %v273, 1.0
    %v275 = vrcp.pop %v274
    %v276 = vmul.f32 1.0, %v275
    %278 = vrot.lane.b32.xlu0 %v267, 64
    %v279 = vpop.permute.xlu0 %278
    %v281 = vmul.f32 %v276, %v279
    %283 = vrot.lane.b32.xlu0 %v281, 64
    %v284 = vpop.permute.xlu0 %283
    %v286 = vadd.f32 %v190, %v284
    %v287 = vtanh.pop %v286
    %v288 = vsub.f32 1.0, %v276
    %290 = vrot.lane.b32.xlu0 %v287, 96
    %v291 = vpop.permute.xlu0 %290
    %v293 = vmul.f32 %v288, %v291
    %294 = vrot.lane.b32.xlu0 %v189, 32
    %v295 = vpop.permute.xlu0 %294
    %v297 = vmul.f32 %v276, %v295
    %v298 = vadd.f32 %v293, %v297
    %300 = vrot.lane.b32.xlu0 %v298, 96
    %v301 = vpop.permute.xlu0 %300
    %303 = vst.msk [vmem:[#allocation3] sm:$0xff] %vm182, %v301
    %304 = vst.msk [vmem:[%s5] sm:$0xff] %vm182, %v301
    %v305 = vld [vmem:[#allocation3] sm:$0xff]
    %s306 = scalar_lea.vmem [#allocation2], 8
    %v307 = vld [vmem:[%s306] sm:$0xff]
    %v309 = vsel %vm182, %v305, 0
    %311 = vmatprep.subr.mxu0 0.0
    %312 = vmatpush1.msra.mxu0 0.0
    %313 = vmatprep.subr.mxu0 0.0
    %314 = vmatpush1.msra.mxu0 0.0
    %315 = vmatprep.subr.mxu0 0.0
    %316 = vmatpush1.msra.mxu0 0.0
    %317 = vmatprep.subr.mxu0 0.0
    %318 = vmatpush1.msra.mxu0 0.0
    %319 = vmatprep.subr.mxu0 0.0
    %320 = vmatpush1.msra.mxu0 0.0
    %321 = vmatprep.subr.mxu0 0.0
    %322 = vmatpush1.msra.mxu0 0.0
    %323 = vmatprep.subr.mxu0 0.0
    %324 = vmatpush1.msra.mxu0 0.0
    %325 = vmatprep.subr.mxu0 0.0
    %326 = vmatpush1.msra.mxu0 0.0
    %327 = vmatprep.subr.mxu0 0.0
    %328 = vmatpush1.msra.mxu0 0.0
    %329 = vmatprep.subr.mxu0 0.0
    %330 = vmatpush1.msra.mxu0 0.0
    %331 = vmatprep.subr.mxu0 0.0
    %332 = vmatpush1.msra.mxu0 0.0
    %333 = vmatprep.subr.mxu0 0.0
    %334 = vmatpush1.msra.mxu0 0.0
    %335 = vmatprep.subr.mxu0 0.0
    %336 = vmatpush1.msra.mxu0 %v187
    %337 = vmatprep.subr.mxu0 0.0
    %338 = vmatpush1.msra.mxu0 %v186
    %339 = vmatprep.subr.mxu0 0.0
    %340 = vmatpush1.msra.mxu0 %v185
    %341 = vmatprep.subr.mxu0 0.0
    %342 = vmatpush1.msra.mxu0 %v184
    %343 = vmatprep.subr.mxu0 0.0
    %344 = vmatpush2.msra.mxu0 0.0
    %345 = vmatprep.subr.mxu0 0.0
    %346 = vmatpush2.msra.mxu0 0.0
    %347 = vmatprep.subr.mxu0 0.0
    %348 = vmatpush2.msra.mxu0 0.0
    %349 = vmatprep.subr.mxu0 0.0
    %350 = vmatpush2.msra.mxu0 0.0
    %351 = vmatprep.subr.mxu0 0.0
    %352 = vmatpush2.msra.mxu0 0.0
    %353 = vmatprep.subr.mxu0 0.0
    %354 = vmatpush2.msra.mxu0 0.0
    %355 = vmatprep.subr.mxu0 0.0
    %356 = vmatpush2.msra.mxu0 0.0
    %357 = vmatprep.subr.mxu0 0.0
    %358 = vmatpush2.msra.mxu0 0.0
    %359 = vmatprep.subr.mxu0 0.0
    %360 = vmatpush2.msra.mxu0 0.0
    %361 = vmatprep.subr.mxu0 0.0
    %362 = vmatpush2.msra.mxu0 0.0
    %363 = vmatprep.subr.mxu0 0.0
    %364 = vmatpush2.msra.mxu0 0.0
    %365 = vmatprep.subr.mxu0 0.0
    %366 = vmatpush2.msra.mxu0 0.0
    %367 = vmatprep.subr.mxu0 0.0
    %368 = vmatpush2.msra.mxu0 0.0
    %369 = vmatprep.subr.mxu0 0.0
    %370 = vmatpush2.msra.mxu0 0.0
    %371 = vmatprep.subr.mxu0 0.0
    %372 = vmatpush2.msra.mxu0 0.0
    %373 = vmatprep.subr.mxu0 0.0
    %374 = vmatpush2.msra.mxu0 0.0
    %375 = vmatprep.mubr.f32.mxu0 0.0
    %376 = vmatmul.mubr.f32.gmra.mxu0 %v309
    %v377 = vpop.f32.mrf.mxu0
    %v378 = vadd.f32 %v195, %v377
    %v379 = vpop.f32.mrf.mxu0
    %380 = vdwg.mxu0
    %v381 = vadd.f32 %v307, %v378
    %v382 = vxor.u32 %v381, 2147483648
    %v383 = vmul.f32 %v382, 1.442695
    %v384 = vpow.pop %v383
    %v385 = vadd.f32 %v384, 1.0
    %v386 = vrcp.pop %v385
    %v387 = vmul.f32 1.0, %v386
    %389 = vrot.lane.b32.xlu0 %v378, 64
    %v390 = vpop.permute.xlu0 %389
    %v392 = vmul.f32 %v387, %v390
    %394 = vrot.lane.b32.xlu0 %v392, 64
    %v395 = vpop.permute.xlu0 %394
    %v397 = vadd.f32 %v307, %v395
    %v398 = vtanh.pop %v397
    %v399 = vsub.f32 1.0, %v387
    %401 = vrot.lane.b32.xlu0 %v398, 96
    %v402 = vpop.permute.xlu0 %401
    %v404 = vmul.f32 %v399, %v402
    %405 = vrot.lane.b32.xlu0 %v305, 32
    %v406 = vpop.permute.xlu0 %405
    %v408 = vmul.f32 %v387, %v406
    %v409 = vadd.f32 %v404, %v408
    %411 = vrot.lane.b32.xlu0 %v409, 96
    %v412 = vpop.permute.xlu0 %411
    %414 = vst.msk [vmem:[#allocation3] sm:$0xff] %vm182, %v412
    %s415 = scalar_lea.vmem %s5, 8
    %416 = vst.msk [vmem:[%s415] sm:$0xff] %vm182, %v412
    %v417 = vld [vmem:[#allocation3] sm:$0xff]
    %s418 = scalar_lea.vmem [#allocation2], 16
    %v419 = vld [vmem:[%s418] sm:$0xff]
    %v421 = vsel %vm182, %v417, 0
    %423 = vmatprep.subr.mxu0 0.0
    %424 = vmatpush1.msra.mxu0 0.0
    %425 = vmatprep.subr.mxu0 0.0
    %426 = vmatpush1.msra.mxu0 0.0
    %427 = vmatprep.subr.mxu0 0.0
    %428 = vmatpush1.msra.mxu0 0.0
    %429 = vmatprep.subr.mxu0 0.0
    %430 = vmatpush1.msra.mxu0 0.0
    %431 = vmatprep.subr.mxu0 0.0
    %432 = vmatpush1.msra.mxu0 0.0
    %433 = vmatprep.subr.mxu0 0.0
    %434 = vmatpush1.msra.mxu0 0.0
    %435 = vmatprep.subr.mxu0 0.0
    %436 = vmatpush1.msra.mxu0 0.0
    %437 = vmatprep.subr.mxu0 0.0
    %438 = vmatpush1.msra.mxu0 0.0
    %439 = vmatprep.subr.mxu0 0.0
    %440 = vmatpush1.msra.mxu0 0.0
    %441 = vmatprep.subr.mxu0 0.0
    %442 = vmatpush1.msra.mxu0 0.0
    %443 = vmatprep.subr.mxu0 0.0
    %444 = vmatpush1.msra.mxu0 0.0
    %445 = vmatprep.subr.mxu0 0.0
    %446 = vmatpush1.msra.mxu0 0.0
    %447 = vmatprep.subr.mxu0 0.0
    %448 = vmatpush1.msra.mxu0 %v187
    %449 = vmatprep.subr.mxu0 0.0
    %450 = vmatpush1.msra.mxu0 %v186
    %451 = vmatprep.subr.mxu0 0.0
    %452 = vmatpush1.msra.mxu0 %v185
    %453 = vmatprep.subr.mxu0 0.0
    %454 = vmatpush1.msra.mxu0 %v184
    %455 = vmatprep.subr.mxu0 0.0
    %456 = vmatpush2.msra.mxu0 0.0
    %457 = vmatprep.subr.mxu0 0.0
    %458 = vmatpush2.msra.mxu0 0.0
    %459 = vmatprep.subr.mxu0 0.0
    %460 = vmatpush2.msra.mxu0 0.0
    %461 = vmatprep.subr.mxu0 0.0
    %462 = vmatpush2.msra.mxu0 0.0
    %463 = vmatprep.subr.mxu0 0.0
    %464 = vmatpush2.msra.mxu0 0.0
    %465 = vmatprep.subr.mxu0 0.0
    %466 = vmatpush2.msra.mxu0 0.0
    %467 = vmatprep.subr.mxu0 0.0
    %468 = vmatpush2.msra.mxu0 0.0
    %469 = vmatprep.subr.mxu0 0.0
    %470 = vmatpush2.msra.mxu0 0.0
    %471 = vmatprep.subr.mxu0 0.0
    %472 = vmatpush2.msra.mxu0 0.0
    %473 = vmatprep.subr.mxu0 0.0
    %474 = vmatpush2.msra.mxu0 0.0
    %475 = vmatprep.subr.mxu0 0.0
    %476 = vmatpush2.msra.mxu0 0.0
    %477 = vmatprep.subr.mxu0 0.0
    %478 = vmatpush2.msra.mxu0 0.0
    %479 = vmatprep.subr.mxu0 0.0
    %480 = vmatpush2.msra.mxu0 0.0
    %481 = vmatprep.subr.mxu0 0.0
    %482 = vmatpush2.msra.mxu0 0.0
    %483 = vmatprep.subr.mxu0 0.0
    %484 = vmatpush2.msra.mxu0 0.0
    %485 = vmatprep.subr.mxu0 0.0
    %486 = vmatpush2.msra.mxu0 0.0
    %487 = vmatprep.mubr.f32.mxu0 0.0
    %488 = vmatmul.mubr.f32.gmra.mxu0 %v421
    %v489 = vpop.f32.mrf.mxu0
    %v490 = vadd.f32 %v195, %v489
    %v491 = vpop.f32.mrf.mxu0
    %492 = vdwg.mxu0
    %v493 = vadd.f32 %v419, %v490
    %v494 = vxor.u32 %v493, 2147483648
    %v495 = vmul.f32 %v494, 1.442695
    %v496 = vpow.pop %v495
    %v497 = vadd.f32 %v496, 1.0
    %v498 = vrcp.pop %v497
    %v499 = vmul.f32 1.0, %v498
    %501 = vrot.lane.b32.xlu0 %v490, 64
    %v502 = vpop.permute.xlu0 %501
    %v504 = vmul.f32 %v499, %v502
    %506 = vrot.lane.b32.xlu0 %v504, 64
    %v507 = vpop.permute.xlu0 %506
    %v509 = vadd.f32 %v419, %v507
    %v510 = vtanh.pop %v509
    %v511 = vsub.f32 1.0, %v499
    %513 = vrot.lane.b32.xlu0 %v510, 96
    %v514 = vpop.permute.xlu0 %513
    %v516 = vmul.f32 %v511, %v514
    %517 = vrot.lane.b32.xlu0 %v417, 32
    %v518 = vpop.permute.xlu0 %517
    %v520 = vmul.f32 %v499, %v518
    %v521 = vadd.f32 %v516, %v520
    %523 = vrot.lane.b32.xlu0 %v521, 96
    %v524 = vpop.permute.xlu0 %523
    %526 = vst.msk [vmem:[#allocation3] sm:$0xff] %vm182, %v524
    %s527 = scalar_lea.vmem %s5, 16
    %528 = vst.msk [vmem:[%s527] sm:$0xff] %vm182, %v524
    %v529 = vld [vmem:[#allocation3] sm:$0xff]
    %s530 = scalar_lea.vmem [#allocation2], 24
    %v531 = vld [vmem:[%s530] sm:$0xff]
    %v533 = vsel %vm182, %v529, 0
    %535 = vmatprep.subr.mxu0 0.0
    %536 = vmatpush1.msra.mxu0 0.0
    %537 = vmatprep.subr.mxu0 0.0
    %538 = vmatpush1.msra.mxu0 0.0
    %539 = vmatprep.subr.mxu0 0.0
    %540 = vmatpush1.msra.mxu0 0.0
    %541 = vmatprep.subr.mxu0 0.0
    %542 = vmatpush1.msra.mxu0 0.0
    %543 = vmatprep.subr.mxu0 0.0
    %544 = vmatpush1.msra.mxu0 0.0
    %545 = vmatprep.subr.mxu0 0.0
    %546 = vmatpush1.msra.mxu0 0.0
    %547 = vmatprep.subr.mxu0 0.0
    %548 = vmatpush1.msra.mxu0 0.0
    %549 = vmatprep.subr.mxu0 0.0
    %550 = vmatpush1.msra.mxu0 0.0
    %551 = vmatprep.subr.mxu0 0.0
    %552 = vmatpush1.msra.mxu0 0.0
    %553 = vmatprep.subr.mxu0 0.0
    %554 = vmatpush1.msra.mxu0 0.0
    %555 = vmatprep.subr.mxu0 0.0
    %556 = vmatpush1.msra.mxu0 0.0
    %557 = vmatprep.subr.mxu0 0.0
    %558 = vmatpush1.msra.mxu0 0.0
    %559 = vmatprep.subr.mxu0 0.0
    %560 = vmatpush1.msra.mxu0 %v187
    %561 = vmatprep.subr.mxu0 0.0
    %562 = vmatpush1.msra.mxu0 %v186
    %563 = vmatprep.subr.mxu0 0.0
    %564 = vmatpush1.msra.mxu0 %v185
    %565 = vmatprep.subr.mxu0 0.0
    %566 = vmatpush1.msra.mxu0 %v184
    %567 = vmatprep.subr.mxu0 0.0
    %568 = vmatpush2.msra.mxu0 0.0
    %569 = vmatprep.subr.mxu0 0.0
    %570 = vmatpush2.msra.mxu0 0.0
    %571 = vmatprep.subr.mxu0 0.0
    %572 = vmatpush2.msra.mxu0 0.0
    %573 = vmatprep.subr.mxu0 0.0
    %574 = vmatpush2.msra.mxu0 0.0
    %575 = vmatprep.subr.mxu0 0.0
    %576 = vmatpush2.msra.mxu0 0.0
    %577 = vmatprep.subr.mxu0 0.0
    %578 = vmatpush2.msra.mxu0 0.0
    %579 = vmatprep.subr.mxu0 0.0
    %580 = vmatpush2.msra.mxu0 0.0
    %581 = vmatprep.subr.mxu0 0.0
    %582 = vmatpush2.msra.mxu0 0.0
    %583 = vmatprep.subr.mxu0 0.0
    %584 = vmatpush2.msra.mxu0 0.0
    %585 = vmatprep.subr.mxu0 0.0
    %586 = vmatpush2.msra.mxu0 0.0
    %587 = vmatprep.subr.mxu0 0.0
    %588 = vmatpush2.msra.mxu0 0.0
    %589 = vmatprep.subr.mxu0 0.0
    %590 = vmatpush2.msra.mxu0 0.0
    %591 = vmatprep.subr.mxu0 0.0
    %592 = vmatpush2.msra.mxu0 0.0
    %593 = vmatprep.subr.mxu0 0.0
    %594 = vmatpush2.msra.mxu0 0.0
    %595 = vmatprep.subr.mxu0 0.0
    %596 = vmatpush2.msra.mxu0 0.0
    %597 = vmatprep.subr.mxu0 0.0
    %598 = vmatpush2.msra.mxu0 0.0
    %599 = vmatprep.mubr.f32.mxu0 0.0
    %600 = vmatmul.mubr.f32.gmra.mxu0 %v533
    %v601 = vpop.f32.mrf.mxu0
    %v602 = vadd.f32 %v195, %v601
    %v603 = vpop.f32.mrf.mxu0
    %604 = vdwg.mxu0
    %v605 = vadd.f32 %v531, %v602
    %v606 = vxor.u32 %v605, 2147483648
    %v607 = vmul.f32 %v606, 1.442695
    %v608 = vpow.pop %v607
    %v609 = vadd.f32 %v608, 1.0
    %v610 = vrcp.pop %v609
    %v611 = vmul.f32 1.0, %v610
    %613 = vrot.lane.b32.xlu0 %v602, 64
    %v614 = vpop.permute.xlu0 %613
    %v616 = vmul.f32 %v611, %v614
    %618 = vrot.lane.b32.xlu0 %v616, 64
    %v619 = vpop.permute.xlu0 %618
    %v621 = vadd.f32 %v531, %v619
    %v622 = vtanh.pop %v621
    %v623 = vsub.f32 1.0, %v611
    %625 = vrot.lane.b32.xlu0 %v622, 96
    %v626 = vpop.permute.xlu0 %625
    %v628 = vmul.f32 %v623, %v626
    %629 = vrot.lane.b32.xlu0 %v529, 32
    %v630 = vpop.permute.xlu0 %629
    %v632 = vmul.f32 %v611, %v630
    %v633 = vadd.f32 %v628, %v632
    %635 = vrot.lane.b32.xlu0 %v633, 96
    %v636 = vpop.permute.xlu0 %635
    %638 = vst.msk [vmem:[#allocation3] sm:$0xff] %vm182, %v636
    %s639 = scalar_lea.vmem %s5, 24
    %640 = vst.msk [vmem:[%s639] sm:$0xff] %vm182, %v636
    %v641 = vld [vmem:[#allocation3] sm:$0xff]
    %s642 = scalar_lea.vmem [#allocation2], 32
    %v643 = vld [vmem:[%s642] sm:$0xff]
    %v645 = vsel %vm182, %v641, 0
    %647 = vmatprep.subr.mxu0 0.0
    %648 = vmatpush1.msra.mxu0 0.0
    %649 = vmatprep.subr.mxu0 0.0
    %650 = vmatpush1.msra.mxu0 0.0
    %651 = vmatprep.subr.mxu0 0.0
    %652 = vmatpush1.msra.mxu0 0.0
    %653 = vmatprep.subr.mxu0 0.0
    %654 = vmatpush1.msra.mxu0 0.0
    %655 = vmatprep.subr.mxu0 0.0
    %656 = vmatpush1.msra.mxu0 0.0
    %657 = vmatprep.subr.mxu0 0.0
    %658 = vmatpush1.msra.mxu0 0.0
    %659 = vmatprep.subr.mxu0 0.0
    %660 = vmatpush1.msra.mxu0 0.0
    %661 = vmatprep.subr.mxu0 0.0
    %662 = vmatpush1.msra.mxu0 0.0
    %663 = vmatprep.subr.mxu0 0.0
    %664 = vmatpush1.msra.mxu0 0.0
    %665 = vmatprep.subr.mxu0 0.0
    %666 = vmatpush1.msra.mxu0 0.0
    %667 = vmatprep.subr.mxu0 0.0
    %668 = vmatpush1.msra.mxu0 0.0
    %669 = vmatprep.subr.mxu0 0.0
    %670 = vmatpush1.msra.mxu0 0.0
    %671 = vmatprep.subr.mxu0 0.0
    %672 = vmatpush1.msra.mxu0 %v187
    %673 = vmatprep.subr.mxu0 0.0
    %674 = vmatpush1.msra.mxu0 %v186
    %675 = vmatprep.subr.mxu0 0.0
    %676 = vmatpush1.msra.mxu0 %v185
    %677 = vmatprep.subr.mxu0 0.0
    %678 = vmatpush1.msra.mxu0 %v184
    %679 = vmatprep.subr.mxu0 0.0
    %680 = vmatpush2.msra.mxu0 0.0
    %681 = vmatprep.subr.mxu0 0.0
    %682 = vmatpush2.msra.mxu0 0.0
    %683 = vmatprep.subr.mxu0 0.0
    %684 = vmatpush2.msra.mxu0 0.0
    %685 = vmatprep.subr.mxu0 0.0
    %686 = vmatpush2.msra.mxu0 0.0
    %687 = vmatprep.subr.mxu0 0.0
    %688 = vmatpush2.msra.mxu0 0.0
    %689 = vmatprep.subr.mxu0 0.0
    %690 = vmatpush2.msra.mxu0 0.0
    %691 = vmatprep.subr.mxu0 0.0
    %692 = vmatpush2.msra.mxu0 0.0
    %693 = vmatprep.subr.mxu0 0.0
    %694 = vmatpush2.msra.mxu0 0.0
    %695 = vmatprep.subr.mxu0 0.0
    %696 = vmatpush2.msra.mxu0 0.0
    %697 = vmatprep.subr.mxu0 0.0
    %698 = vmatpush2.msra.mxu0 0.0
    %699 = vmatprep.subr.mxu0 0.0
    %700 = vmatpush2.msra.mxu0 0.0
    %701 = vmatprep.subr.mxu0 0.0
    %702 = vmatpush2.msra.mxu0 0.0
    %703 = vmatprep.subr.mxu0 0.0
    %704 = vmatpush2.msra.mxu0 0.0
    %705 = vmatprep.subr.mxu0 0.0
    %706 = vmatpush2.msra.mxu0 0.0
    %707 = vmatprep.subr.mxu0 0.0
    %708 = vmatpush2.msra.mxu0 0.0
    %709 = vmatprep.subr.mxu0 0.0
    %710 = vmatpush2.msra.mxu0 0.0
    %711 = vmatprep.mubr.f32.mxu0 0.0
    %712 = vmatmul.mubr.f32.gmra.mxu0 %v645
    %v713 = vpop.f32.mrf.mxu0
    %v714 = vadd.f32 %v195, %v713
    %v715 = vpop.f32.mrf.mxu0
    %716 = vdwg.mxu0
    %v717 = vadd.f32 %v643, %v714
    %v718 = vxor.u32 %v717, 2147483648
    %v719 = vmul.f32 %v718, 1.442695
    %v720 = vpow.pop %v719
    %v721 = vadd.f32 %v720, 1.0
    %v722 = vrcp.pop %v721
    %v723 = vmul.f32 1.0, %v722
    %725 = vrot.lane.b32.xlu0 %v714, 64
    %v726 = vpop.permute.xlu0 %725
    %v728 = vmul.f32 %v723, %v726
    %730 = vrot.lane.b32.xlu0 %v728, 64
    %v731 = vpop.permute.xlu0 %730
    %v733 = vadd.f32 %v643, %v731
    %v734 = vtanh.pop %v733
    %v735 = vsub.f32 1.0, %v723
    %737 = vrot.lane.b32.xlu0 %v734, 96
    %v738 = vpop.permute.xlu0 %737
    %v740 = vmul.f32 %v735, %v738
    %741 = vrot.lane.b32.xlu0 %v641, 32
    %v742 = vpop.permute.xlu0 %741
    %v744 = vmul.f32 %v723, %v742
    %v745 = vadd.f32 %v740, %v744
    %747 = vrot.lane.b32.xlu0 %v745, 96
    %v748 = vpop.permute.xlu0 %747
    %750 = vst.msk [vmem:[#allocation3] sm:$0xff] %vm182, %v748
    %s751 = scalar_lea.vmem %s5, 32
    %752 = vst.msk [vmem:[%s751] sm:$0xff] %vm182, %v748
    %v753 = vld [vmem:[#allocation3] sm:$0xff]
    %s754 = scalar_lea.vmem [#allocation2], 40
    %v755 = vld [vmem:[%s754] sm:$0xff]
    %v757 = vsel %vm182, %v753, 0
    %759 = vmatprep.subr.mxu0 0.0
    %760 = vmatpush1.msra.mxu0 0.0
    %761 = vmatprep.subr.mxu0 0.0
    %762 = vmatpush1.msra.mxu0 0.0
    %763 = vmatprep.subr.mxu0 0.0
    %764 = vmatpush1.msra.mxu0 0.0
    %765 = vmatprep.subr.mxu0 0.0
    %766 = vmatpush1.msra.mxu0 0.0
    %767 = vmatprep.subr.mxu0 0.0
    %768 = vmatpush1.msra.mxu0 0.0
    %769 = vmatprep.subr.mxu0 0.0
    %770 = vmatpush1.msra.mxu0 0.0
    %771 = vmatprep.subr.mxu0 0.0
    %772 = vmatpush1.msra.mxu0 0.0
    %773 = vmatprep.subr.mxu0 0.0
    %774 = vmatpush1.msra.mxu0 0.0
    %775 = vmatprep.subr.mxu0 0.0
    %776 = vmatpush1.msra.mxu0 0.0
    %777 = vmatprep.subr.mxu0 0.0
    %778 = vmatpush1.msra.mxu0 0.0
    %779 = vmatprep.subr.mxu0 0.0
    %780 = vmatpush1.msra.mxu0 0.0
    %781 = vmatprep.subr.mxu0 0.0
    %782 = vmatpush1.msra.mxu0 0.0
    %783 = vmatprep.subr.mxu0 0.0
    %784 = vmatpush1.msra.mxu0 %v187
    %785 = vmatprep.subr.mxu0 0.0
    %786 = vmatpush1.msra.mxu0 %v186
    %787 = vmatprep.subr.mxu0 0.0
    %788 = vmatpush1.msra.mxu0 %v185
    %789 = vmatprep.subr.mxu0 0.0
    %790 = vmatpush1.msra.mxu0 %v184
    %791 = vmatprep.subr.mxu0 0.0
    %792 = vmatpush2.msra.mxu0 0.0
    %793 = vmatprep.subr.mxu0 0.0
    %794 = vmatpush2.msra.mxu0 0.0
    %795 = vmatprep.subr.mxu0 0.0
    %796 = vmatpush2.msra.mxu0 0.0
    %797 = vmatprep.subr.mxu0 0.0
    %798 = vmatpush2.msra.mxu0 0.0
    %799 = vmatprep.subr.mxu0 0.0
    %800 = vmatpush2.msra.mxu0 0.0
    %801 = vmatprep.subr.mxu0 0.0
    %802 = vmatpush2.msra.mxu0 0.0
    %803 = vmatprep.subr.mxu0 0.0
    %804 = vmatpush2.msra.mxu0 0.0
    %805 = vmatprep.subr.mxu0 0.0
    %806 = vmatpush2.msra.mxu0 0.0
    %807 = vmatprep.subr.mxu0 0.0
    %808 = vmatpush2.msra.mxu0 0.0
    %809 = vmatprep.subr.mxu0 0.0
    %810 = vmatpush2.msra.mxu0 0.0
    %811 = vmatprep.subr.mxu0 0.0
    %812 = vmatpush2.msra.mxu0 0.0
    %813 = vmatprep.subr.mxu0 0.0
    %814 = vmatpush2.msra.mxu0 0.0
    %815 = vmatprep.subr.mxu0 0.0
    %816 = vmatpush2.msra.mxu0 0.0
    %817 = vmatprep.subr.mxu0 0.0
    %818 = vmatpush2.msra.mxu0 0.0
    %819 = vmatprep.subr.mxu0 0.0
    %820 = vmatpush2.msra.mxu0 0.0
    %821 = vmatprep.subr.mxu0 0.0
    %822 = vmatpush2.msra.mxu0 0.0
    %823 = vmatprep.mubr.f32.mxu0 0.0
    %824 = vmatmul.mubr.f32.gmra.mxu0 %v757
    %v825 = vpop.f32.mrf.mxu0
    %v826 = vadd.f32 %v195, %v825
    %v827 = vpop.f32.mrf.mxu0
    %828 = vdwg.mxu0
    %v829 = vadd.f32 %v755, %v826
    %v830 = vxor.u32 %v829, 2147483648
    %v831 = vmul.f32 %v830, 1.442695
    %v832 = vpow.pop %v831
    %v833 = vadd.f32 %v832, 1.0
    %v834 = vrcp.pop %v833
    %v835 = vmul.f32 1.0, %v834
    %837 = vrot.lane.b32.xlu0 %v826, 64
    %v838 = vpop.permute.xlu0 %837
    %v840 = vmul.f32 %v835, %v838
    %842 = vrot.lane.b32.xlu0 %v840, 64
    %v843 = vpop.permute.xlu0 %842
    %v845 = vadd.f32 %v755, %v843
    %v846 = vtanh.pop %v845
    %v847 = vsub.f32 1.0, %v835
    %849 = vrot.lane.b32.xlu0 %v846, 96
    %v850 = vpop.permute.xlu0 %849
    %v852 = vmul.f32 %v847, %v850
    %853 = vrot.lane.b32.xlu0 %v753, 32
    %v854 = vpop.permute.xlu0 %853
    %v856 = vmul.f32 %v835, %v854
    %v857 = vadd.f32 %v852, %v856
    %859 = vrot.lane.b32.xlu0 %v857, 96
    %v860 = vpop.permute.xlu0 %859
    %862 = vst.msk [vmem:[#allocation3] sm:$0xff] %vm182, %v860
    %s863 = scalar_lea.vmem %s5, 40
    %864 = vst.msk [vmem:[%s863] sm:$0xff] %vm182, %v860
    %v865 = vld [vmem:[#allocation3] sm:$0xff]
    %s866 = scalar_lea.vmem [#allocation2], 48
    %v867 = vld [vmem:[%s866] sm:$0xff]
    %v869 = vsel %vm182, %v865, 0
    %871 = vmatprep.subr.mxu0 0.0
    %872 = vmatpush1.msra.mxu0 0.0
    %873 = vmatprep.subr.mxu0 0.0
    %874 = vmatpush1.msra.mxu0 0.0
    %875 = vmatprep.subr.mxu0 0.0
    %876 = vmatpush1.msra.mxu0 0.0
    %877 = vmatprep.subr.mxu0 0.0
    %878 = vmatpush1.msra.mxu0 0.0
    %879 = vmatprep.subr.mxu0 0.0
    %880 = vmatpush1.msra.mxu0 0.0
    %881 = vmatprep.subr.mxu0 0.0
    %882 = vmatpush1.msra.mxu0 0.0
    %883 = vmatprep.subr.mxu0 0.0
    %884 = vmatpush1.msra.mxu0 0.0
    %885 = vmatprep.subr.mxu0 0.0
    %886 = vmatpush1.msra.mxu0 0.0
    %887 = vmatprep.subr.mxu0 0.0
    %888 = vmatpush1.msra.mxu0 0.0
    %889 = vmatprep.subr.mxu0 0.0
    %890 = vmatpush1.msra.mxu0 0.0
    %891 = vmatprep.subr.mxu0 0.0
    %892 = vmatpush1.msra.mxu0 0.0
    %893 = vmatprep.subr.mxu0 0.0
    %894 = vmatpush1.msra.mxu0 0.0
    %895 = vmatprep.subr.mxu0 0.0
    %896 = vmatpush1.msra.mxu0 %v187
    %897 = vmatprep.subr.mxu0 0.0
    %898 = vmatpush1.msra.mxu0 %v186
    %899 = vmatprep.subr.mxu0 0.0
    %900 = vmatpush1.msra.mxu0 %v185
    %901 = vmatprep.subr.mxu0 0.0
    %902 = vmatpush1.msra.mxu0 %v184
    %903 = vmatprep.subr.mxu0 0.0
    %904 = vmatpush2.msra.mxu0 0.0
    %905 = vmatprep.subr.mxu0 0.0
    %906 = vmatpush2.msra.mxu0 0.0
    %907 = vmatprep.subr.mxu0 0.0
    %908 = vmatpush2.msra.mxu0 0.0
    %909 = vmatprep.subr.mxu0 0.0
    %910 = vmatpush2.msra.mxu0 0.0
    %911 = vmatprep.subr.mxu0 0.0
    %912 = vmatpush2.msra.mxu0 0.0
    %913 = vmatprep.subr.mxu0 0.0
    %914 = vmatpush2.msra.mxu0 0.0
    %915 = vmatprep.subr.mxu0 0.0
    %916 = vmatpush2.msra.mxu0 0.0
    %917 = vmatprep.subr.mxu0 0.0
    %918 = vmatpush2.msra.mxu0 0.0
    %919 = vmatprep.subr.mxu0 0.0
    %920 = vmatpush2.msra.mxu0 0.0
    %921 = vmatprep.subr.mxu0 0.0
    %922 = vmatpush2.msra.mxu0 0.0
    %923 = vmatprep.subr.mxu0 0.0
    %924 = vmatpush2.msra.mxu0 0.0
    %925 = vmatprep.subr.mxu0 0.0
    %926 = vmatpush2.msra.mxu0 0.0
    %927 = vmatprep.subr.mxu0 0.0
    %928 = vmatpush2.msra.mxu0 0.0
    %929 = vmatprep.subr.mxu0 0.0
    %930 = vmatpush2.msra.mxu0 0.0
    %931 = vmatprep.subr.mxu0 0.0
    %932 = vmatpush2.msra.mxu0 0.0
    %933 = vmatprep.subr.mxu0 0.0
    %934 = vmatpush2.msra.mxu0 0.0
    %935 = vmatprep.mubr.f32.mxu0 0.0
    %936 = vmatmul.mubr.f32.gmra.mxu0 %v869
    %v937 = vpop.f32.mrf.mxu0
    %v938 = vadd.f32 %v195, %v937
    %v939 = vpop.f32.mrf.mxu0
    %940 = vdwg.mxu0
    %v941 = vadd.f32 %v867, %v938
    %v942 = vxor.u32 %v941, 2147483648
    %v943 = vmul.f32 %v942, 1.442695
    %v944 = vpow.pop %v943
    %v945 = vadd.f32 %v944, 1.0
    %v946 = vrcp.pop %v945
    %v947 = vmul.f32 1.0, %v946
    %949 = vrot.lane.b32.xlu0 %v938, 64
    %v950 = vpop.permute.xlu0 %949
    %v952 = vmul.f32 %v947, %v950
    %954 = vrot.lane.b32.xlu0 %v952, 64
    %v955 = vpop.permute.xlu0 %954
    %v957 = vadd.f32 %v867, %v955
    %v958 = vtanh.pop %v957
    %v959 = vsub.f32 1.0, %v947
    %961 = vrot.lane.b32.xlu0 %v958, 96
    %v962 = vpop.permute.xlu0 %961
    %v964 = vmul.f32 %v959, %v962
    %965 = vrot.lane.b32.xlu0 %v865, 32
    %v966 = vpop.permute.xlu0 %965
    %v968 = vmul.f32 %v947, %v966
    %v969 = vadd.f32 %v964, %v968
    %971 = vrot.lane.b32.xlu0 %v969, 96
    %v972 = vpop.permute.xlu0 %971
    %974 = vst.msk [vmem:[#allocation3] sm:$0xff] %vm182, %v972
    %s975 = scalar_lea.vmem %s5, 48
    %976 = vst.msk [vmem:[%s975] sm:$0xff] %vm182, %v972
    %v977 = vld [vmem:[#allocation3] sm:$0xff]
    %s978 = scalar_lea.vmem [#allocation2], 56
    %v979 = vld [vmem:[%s978] sm:$0xff]
    %v981 = vsel %vm182, %v977, 0
    %983 = vmatprep.subr.mxu0 0.0
    %984 = vmatpush1.msra.mxu0 0.0
    %985 = vmatprep.subr.mxu0 0.0
    %986 = vmatpush1.msra.mxu0 0.0
    %987 = vmatprep.subr.mxu0 0.0
    %988 = vmatpush1.msra.mxu0 0.0
    %989 = vmatprep.subr.mxu0 0.0
    %990 = vmatpush1.msra.mxu0 0.0
    %991 = vmatprep.subr.mxu0 0.0
    %992 = vmatpush1.msra.mxu0 0.0
    %993 = vmatprep.subr.mxu0 0.0
    %994 = vmatpush1.msra.mxu0 0.0
    %995 = vmatprep.subr.mxu0 0.0
    %996 = vmatpush1.msra.mxu0 0.0
    %997 = vmatprep.subr.mxu0 0.0
    %998 = vmatpush1.msra.mxu0 0.0
    %999 = vmatprep.subr.mxu0 0.0
    %1000 = vmatpush1.msra.mxu0 0.0
    %1001 = vmatprep.subr.mxu0 0.0
    %1002 = vmatpush1.msra.mxu0 0.0
    %1003 = vmatprep.subr.mxu0 0.0
    %1004 = vmatpush1.msra.mxu0 0.0
    %1005 = vmatprep.subr.mxu0 0.0
    %1006 = vmatpush1.msra.mxu0 0.0
    %1007 = vmatprep.subr.mxu0 0.0
    %1008 = vmatpush1.msra.mxu0 %v187
    %1009 = vmatprep.subr.mxu0 0.0
    %1010 = vmatpush1.msra.mxu0 %v186
    %1011 = vmatprep.subr.mxu0 0.0
    %1012 = vmatpush1.msra.mxu0 %v185
    %1013 = vmatprep.subr.mxu0 0.0
    %1014 = vmatpush1.msra.mxu0 %v184
    %1015 = vmatprep.subr.mxu0 0.0
    %1016 = vmatpush2.msra.mxu0 0.0
    %1017 = vmatprep.subr.mxu0 0.0
    %1018 = vmatpush2.msra.mxu0 0.0
    %1019 = vmatprep.subr.mxu0 0.0
    %1020 = vmatpush2.msra.mxu0 0.0
    %1021 = vmatprep.subr.mxu0 0.0
    %1022 = vmatpush2.msra.mxu0 0.0
    %1023 = vmatprep.subr.mxu0 0.0
    %1024 = vmatpush2.msra.mxu0 0.0
    %1025 = vmatprep.subr.mxu0 0.0
    %1026 = vmatpush2.msra.mxu0 0.0
    %1027 = vmatprep.subr.mxu0 0.0
    %1028 = vmatpush2.msra.mxu0 0.0
    %1029 = vmatprep.subr.mxu0 0.0
    %1030 = vmatpush2.msra.mxu0 0.0
    %1031 = vmatprep.subr.mxu0 0.0
    %1032 = vmatpush2.msra.mxu0 0.0
    %1033 = vmatprep.subr.mxu0 0.0
    %1034 = vmatpush2.msra.mxu0 0.0
    %1035 = vmatprep.subr.mxu0 0.0
    %1036 = vmatpush2.msra.mxu0 0.0
    %1037 = vmatprep.subr.mxu0 0.0
    %1038 = vmatpush2.msra.mxu0 0.0
    %1039 = vmatprep.subr.mxu0 0.0
    %1040 = vmatpush2.msra.mxu0 0.0
    %1041 = vmatprep.subr.mxu0 0.0
    %1042 = vmatpush2.msra.mxu0 0.0
    %1043 = vmatprep.subr.mxu0 0.0
    %1044 = vmatpush2.msra.mxu0 0.0
    %1045 = vmatprep.subr.mxu0 0.0
    %1046 = vmatpush2.msra.mxu0 0.0
    %1047 = vmatprep.mubr.f32.mxu0 0.0
    %1048 = vmatmul.mubr.f32.gmra.mxu0 %v981
    %v1049 = vpop.f32.mrf.mxu0
    %v1050 = vadd.f32 %v195, %v1049
    %v1051 = vpop.f32.mrf.mxu0
    %1052 = vdwg.mxu0
    %v1053 = vadd.f32 %v979, %v1050
    %v1054 = vxor.u32 %v1053, 2147483648
    %v1055 = vmul.f32 %v1054, 1.442695
    %v1056 = vpow.pop %v1055
    %v1057 = vadd.f32 %v1056, 1.0
    %v1058 = vrcp.pop %v1057
    %v1059 = vmul.f32 1.0, %v1058
    %1061 = vrot.lane.b32.xlu0 %v1050, 64
    %v1062 = vpop.permute.xlu0 %1061
    %v1064 = vmul.f32 %v1059, %v1062
    %1066 = vrot.lane.b32.xlu0 %v1064, 64
    %v1067 = vpop.permute.xlu0 %1066
    %v1069 = vadd.f32 %v979, %v1067
    %v1070 = vtanh.pop %v1069
    %v1071 = vsub.f32 1.0, %v1059
    %1073 = vrot.lane.b32.xlu0 %v1070, 96
    %v1074 = vpop.permute.xlu0 %1073
    %v1076 = vmul.f32 %v1071, %v1074
    %1077 = vrot.lane.b32.xlu0 %v977, 32
    %v1078 = vpop.permute.xlu0 %1077
    %v1080 = vmul.f32 %v1059, %v1078
    %v1081 = vadd.f32 %v1076, %v1080
    %1083 = vrot.lane.b32.xlu0 %v1081, 96
    %v1084 = vpop.permute.xlu0 %1083
    %1086 = vst.msk [vmem:[#allocation3] sm:$0xff] %vm182, %v1084
    %s1087 = scalar_lea.vmem %s5, 56
    %1088 = vst.msk [vmem:[%s1087] sm:$0xff] %vm182, %v1084
    %v1089 = vld [vmem:[#allocation3] sm:$0xff]
    %1090 = vst.msk [vmem:[#allocation4] sm:$0xff] %vm182, %v1089
    // Predicated region
    $region22: #{tpu_custom_call.1} parent=1 // pred_check
      _
    $region23: #{tpu_custom_call.1} parent=1 // pred_check_branch
      %1092 = sbr.rel (0) target = $region25
    $region24: #{tpu_custom_call.1} parent=1 // pred_region
      _
    $region25: #{tpu_custom_call.1} parent=1 // pred_fallthru
      _
    // Predicated region
    $region26: #{tpu_custom_call.1} parent=1 // pred_check
      _
    $region27: #{tpu_custom_call.1} parent=1 // pred_check_branch
      %1094 = sbr.rel (0) target = $region29
    $region28: #{tpu_custom_call.1} parent=1 // pred_region
      %s1096 = ssub.s32 128, 128
      %1097 = vsyncadd [#allocation5], %s1096
      %s1099 = sshll.u32 [#allocation4], 4
      %s1100 = int_to_ptr.vmem [resolvable:$true] %s1099
      %1102 = dma.vmem_to_hbm [thread:$0]  %s1100, 128, %s6, [#allocation5]
    $region29: #{tpu_custom_call.1} parent=1 // pred_fallthru
      _
    // Predicated region
    $region30: #{tpu_custom_call.1} parent=1 // pred_check
      _
    $region31: #{tpu_custom_call.1} parent=1 // pred_check_branch
      %1104 = sbr.rel (0) target = $region33
    $region32: #{tpu_custom_call.1} parent=1 // pred_region
      _
    $region33: #{tpu_custom_call.1} parent=1 // pred_fallthru
      _
    // Predicated region
    $region34: #{tpu_custom_call.1} parent=1 // pred_check
      _
    $region35: #{tpu_custom_call.1} parent=1 // pred_check_branch
      %1106 = sbr.rel (0) target = $region37
    $region36: #{tpu_custom_call.1} parent=1 // pred_region
      %1107 = dma.done [#allocation5], 128
    $region37: #{tpu_custom_call.1} parent=1 // pred_fallthru
      _
    %1108 = vsyncpa [#allocation5], 1

</llo_original>
